<compile_context>
chip_gen: v6e
topology: v6e:2x2x1
jax: 0.10.0
libtpu: 0.0.40
codegen_flags: <defaults>
</compile_context>

<pallas_src>
import jax
import jax.numpy as jnp
from jax.experimental import pallas as pl
from jax.experimental.pallas import tpu as pltpu

_H1, _H2 = 512, 256
_OUT_PAD = 128                       # lane-dense padded width for the (.., 1) output
_RESIDENT_W1_BYTES = 16 * 1024 * 1024  # threshold on a single bf16 W1 copy


def _round_up(x, m):
    return (x + m - 1) // m * m


def _leaky_relu(x, slope=0.2):
    return jnp.where(x > 0, x, slope * x)


def _maybe_pad(a, pads):
    """jnp.pad only when some pad width is non-zero (avoid an extra HBM copy)."""
    if all(lo == 0 and hi == 0 for lo, hi in pads):
        return a
    return jnp.pad(a, pads)


def _vmem_limit(requested_bytes):
    """Generation-aware VMEM request with headroom below physical capacity."""
    try:
        cap = int(pltpu.get_tpu_info().vmem_capacity_bytes)
    except Exception:
        cap = 64 * 1024 * 1024       # conservative default (v7x per-TC VMEM)
    return int(min(int(requested_bytes), int(cap * 0.75)))


# ---------------------------------------------------------------------------
# Kernels
# ---------------------------------------------------------------------------
def _disc_kernel_resident(x_ref, w1_ref, b1_ref, w2_ref, b2_ref, w3_ref, b3_ref,
                          out_ref):
    # 1-D grid over batch tiles. W1 is fully resident (constant index_map).
    # x_ref:  (tb, D_pad) bf16     w1_ref: (D_pad, 512) bf16    b1_ref: (1, 512) f32
    # w2_ref: (512, 256) f32       b2_ref: (1, 256) f32
    # w3_ref: (256, 128) f32 (zero-padded past col 0)           b3_ref: (1, 128) f32
    # out_ref:(tb, 128) f32
    h1 = _leaky_relu(
        jnp.dot(x_ref[...], w1_ref[...], preferred_element_type=jnp.float32)
        + b1_ref[...])
    h2 = _leaky_relu(
        jnp.dot(h1, w2_ref[...], preferred_element_type=jnp.float32)
        + b2_ref[...])
    h3 = jnp.dot(h2, w3_ref[...], preferred_element_type=jnp.float32) + b3_ref[...]
    out_ref[...] = jax.nn.sigmoid(h3).astype(out_ref.dtype)


def _disc_kernel_tiled(x_ref, w1_ref, b1_ref, w2_ref, b2_ref, w3_ref, b3_ref,
                       out_ref, acc_ref):
    # Fallback for very large D. Grid = (B_pad//tb, D_pad//tk); axis 1 = K reduction.
    # x_ref: (tb, tk) bf16   w1_ref: (tk, 512) bf16   acc_ref: (tb, 512) f32 scratch
    k = pl.program_id(1)

    @pl.when(k == 0)
    def _():
        # Seed the accumulator with b1 so the epilogue skips the bias add.
        acc_ref[...] = jnp.broadcast_to(b1_ref[...], acc_ref.shape)

    acc_ref[...] += jnp.dot(x_ref[...], w1_ref[...],
                            preferred_element_type=jnp.float32)

    @pl.when(k == pl.num_programs(1) - 1)
    def _():
        h1 = _leaky_relu(acc_ref[...])
        h2 = _leaky_relu(
            jnp.dot(h1, w2_ref[...], preferred_element_type=jnp.float32)
            + b2_ref[...])
        h3 = jnp.dot(h2, w3_ref[...], preferred_element_type=jnp.float32) \
            + b3_ref[...]
        out_ref[...] = jax.nn.sigmoid(h3).astype(out_ref.dtype)


# ---------------------------------------------------------------------------
# Wrapper
# ---------------------------------------------------------------------------
def discriminator_forward(img, params, *, tb_max=256, tk_max=2048):
    """img: (B, C, H, W) float32. Returns (B, 1) validity scores (float32)."""
    B = img.shape[0]
    x = img.reshape(B, -1)                       # same as torch .view(B, -1)
    D = x.shape[1]
    w1, b1, w2, b2, w3, b3 = params

    # --- batch tiling -------------------------------------------------------
    B_pad8 = _round_up(B, 8)
    tb = min(tb_max, B_pad8)
    if B_pad8 >= 16:
        # Guarantee >= 2 batch tiles so the "parallel" axis can shard across the
        # two TensorCores on v7x (harmless on single-core v5e/v6e).
        tb = min(tb, _round_up((B_pad8 + 1) // 2, 8))
    B_pad = _round_up(B, tb)

    # --- lane-dense padding of the tiny final layer --------------------------
    w3_p = _maybe_pad(w3.astype(jnp.float32),
                      ((0, 0), (0, _OUT_PAD - w3.shape[1])))
    b3_p = _maybe_pad(b3.astype(jnp.float32),
                      ((0, 0), (0, _OUT_PAD - b3.shape[1])))

    # --- bf16 streaming of the layer-1 operands (f32 MXU accumulation) -------
    x_bf = x.astype(jnp.bfloat16)
    w1_bf = w1.astype(jnp.bfloat16)
    b1_f = b1.astype(jnp.float32)
    w2_f = w2.astype(jnp.float32)
    b2_f = b2.astype(jnp.float32)

    D_lane = _round_up(D, 128)
    use_resident = D_lane * _H1 * 2 <= _RESIDENT_W1_BYTES

    # Small params are double-buffered by the pipeline -> count 2x copies.
    small_param_bytes = 2 * 4 * (_H1 + _H1 * _H2 + _H2 + _H2 * _OUT_PAD + _OUT_PAD)

    if use_resident:
        # ---- resident-W1 path: 1-D grid over batch tiles ---------------------
        D_pad = D_lane
        x_p = _maybe_pad(x_bf, ((0, B_pad - B), (0, D_pad - D)))
        w1_p = _maybe_pad(w1_bf, ((0, D_pad - D), (0, 0)))

        grid = (B_pad // tb,)
        in_specs = [
            pl.BlockSpec((tb, D_pad), lambda i: (i, 0)),        # x tile (bf16)
            pl.BlockSpec((D_pad, _H1), lambda i: (0, 0)),       # W1 resident (bf16)
            pl.BlockSpec((1, _H1), lambda i: (0, 0)),           # b1
            pl.BlockSpec((_H1, _H2), lambda i: (0, 0)),         # W2
            pl.BlockSpec((1, _H2), lambda i: (0, 0)),           # b2
            pl.BlockSpec((_H2, _OUT_PAD), lambda i: (0, 0)),    # W3 (padded)
            pl.BlockSpec((1, _OUT_PAD), lambda i: (0, 0)),      # b3 (padded)
        ]
        out_spec = pl.BlockSpec((tb, _OUT_PAD), lambda i: (i, 0))
        scratch_shapes = []
        kernel = _disc_kernel_resident
        dim_sem = ("parallel",)

        vmem_req = (2 * tb * D_pad * 2          # x tiles (bf16, double-buffered)
                    + 2 * D_pad * _H1 * 2       # W1 (bf16, 2 pipeline buffers)
                    + small_param_bytes
                    + 2 * tb * _OUT_PAD * 4     # output tiles
                    + (2 << 20))                # compiler-internal headroom
        bytes_accessed = (B_pad * D_pad * 2 + D_pad * _H1 * 2
                          + small_param_bytes // 2 + B_pad * _OUT_PAD * 4)
    else:
        # ---- K-tiled fallback for very large D -------------------------------
        tk = min(tk_max, D_lane)
        D_pad = _round_up(D, tk)
        x_p = _maybe_pad(x_bf, ((0, B_pad - B), (0, D_pad - D)))
        w1_p = _maybe_pad(w1_bf, ((0, D_pad - D), (0, 0)))

        grid = (B_pad // tb, D_pad // tk)
        in_specs = [
            pl.BlockSpec((tb, tk), lambda i, k: (i, k)),        # x tile (bf16)
            pl.BlockSpec((tk, _H1), lambda i, k: (k, 0)),       # W1 tile (bf16)
            pl.BlockSpec((1, _H1), lambda i, k: (0, 0)),        # b1
            pl.BlockSpec((_H1, _H2), lambda i, k: (0, 0)),      # W2
            pl.BlockSpec((1, _H2), lambda i, k: (0, 0)),        # b2
            pl.BlockSpec((_H2, _OUT_PAD), lambda i, k: (0, 0)),  # W3 (padded)
            pl.BlockSpec((1, _OUT_PAD), lambda i, k: (0, 0)),    # b3 (padded)
        ]
        out_spec = pl.BlockSpec((tb, _OUT_PAD), lambda i, k: (i, 0))
        scratch_shapes = [pltpu.VMEM((tb, _H1), jnp.float32)]
        kernel = _disc_kernel_tiled
        dim_sem = ("parallel", "arbitrary")

        vmem_req = (2 * tb * tk * 2             # x tiles
                    + 2 * tk * _H1 * 2          # W1 tiles
                    + small_param_bytes
                    + 2 * tb * _OUT_PAD * 4     # output tiles
                    + tb * _H1 * 4              # f32 accumulator scratch
                    + (2 << 20))
        n_btiles = B_pad // tb
        # W1 is re-streamed once per batch tile in this path.
        bytes_accessed = (B_pad * D_pad * 2 + n_btiles * D_pad * _H1 * 2
                          + small_param_bytes // 2 + B_pad * _OUT_PAD * 4)

    flops = 2 * B_pad * (D_pad * _H1 + _H1 * _H2 + _H2 * _OUT_PAD)
    cost = pl.CostEstimate(flops=int(flops),
                           transcendentals=int(B_pad * _OUT_PAD),
                           bytes_accessed=int(bytes_accessed))

    out_padded = pl.pallas_call(
        kernel,
        out_shape=jax.ShapeDtypeStruct((B_pad, _OUT_PAD), jnp.float32),
        grid_spec=pltpu.PrefetchScalarGridSpec(
            num_scalar_prefetch=0,
            grid=grid,
            in_specs=in_specs,
            out_specs=out_spec,
            scratch_shapes=scratch_shapes,
        ),
        compiler_params=pltpu.CompilerParams(
            dimension_semantics=dim_sem,
            vmem_limit_bytes=_vmem_limit(vmem_req),
        ),
        cost_estimate=cost,
    )(x_p, w1_p, b1_f, w2_f, b2_f, w3_p, b3_p)

    return out_padded[:B, :1]


# ---------------------------------------------------------------------------
# Init + reference
# ---------------------------------------------------------------------------
def init_params(key, in_dim):
    """Deterministic init mimicking nn.Linear's U(-1/sqrt(fan_in), 1/sqrt(fan_in)).
    Weights are stored as (in_features, out_features)."""
    dims = [(in_dim, _H1), (_H1, _H2), (_H2, 1)]
    params = []
    for (fan_in, fan_out) in dims:
        key, kw, kb = jax.random.split(key, 3)
        bound = 1.0 / jnp.sqrt(jnp.float32(fan_in))
        w = jax.random.uniform(kw, (fan_in, fan_out), jnp.float32, -bound, bound)
        b = jax.random.uniform(kb, (1, fan_out), jnp.float32, -bound, bound)
        params += [w, b]
    return tuple(params)


def reference_forward(img, params):
    """Pure-JAX f32 reference for correctness check."""
    B = img.shape[0]
    x = img.reshape(B, -1)
    w1, b1, w2, b2, w3, b3 = params
    h = _leaky_relu(x @ w1 + b1)
    h = _leaky_relu(h @ w2 + b2)
    return jax.nn.sigmoid(h @ w3 + b3)


if __name__ == "__main__":
    # Small shapes consistent with the module: batch=2, channels=4, img_size=16
    B, C, H, W = 2, 4, 16, 16
    key = jax.random.PRNGKey(0)
    k_img, k_params = jax.random.split(key)

    img = jax.random.normal(k_img, (B, C, H, W), jnp.float32)
    params = init_params(k_params, C * H * W)

    out = discriminator_forward(img, params)
    out = jax.block_until_ready(out)

    ref = reference_forward(img, params)
    assert out.shape == (B, 1)
    # Layer 1 streams x/W1 as bf16 (f32 accumulation): relax from 1e-5 to 1e-2.
    assert jnp.allclose(out, ref, atol=1e-2, rtol=1e-2), (out, ref)

    print("KERNEL_OK")
</pallas_src>

<mosaic_0001>
module attributes {stable_mosaic.version = 11 : i64} {
  func.func @_disc_kernel_resident(%arg0: i32, %arg1: memref<8x1024xbf16, #tpu.memory_space<vmem>>, %arg2: memref<1024x512xbf16, #tpu.memory_space<vmem>>, %arg3: memref<1x512xf32, #tpu.memory_space<vmem>>, %arg4: memref<512x256xf32, #tpu.memory_space<vmem>>, %arg5: memref<1x256xf32, #tpu.memory_space<vmem>>, %arg6: memref<256x128xf32, #tpu.memory_space<vmem>>, %arg7: memref<1x128xf32, #tpu.memory_space<vmem>>, %arg8: memref<8x128xf32, #tpu.memory_space<vmem>>) attributes {dimension_semantics = [#tpu.dimension_semantics<parallel>], iteration_bounds = array<i64: 1>, scalar_prefetch = 0 : i64, scratch_operands = 0 : i64, tpu.core_type = #tpu.core_type<tc>, window_params = [{transform_indices = @transform_0, window_bounds = array<i64: 8, 1024>}, {pipeline_mode = #tpu.pipeline_mode<synchronous>, transform_indices = @transform_1, window_bounds = array<i64: 1024, 512>}, {pipeline_mode = #tpu.pipeline_mode<synchronous>, transform_indices = @transform_2, window_bounds = array<i64: 1, 512>}, {pipeline_mode = #tpu.pipeline_mode<synchronous>, transform_indices = @transform_3, window_bounds = array<i64: 512, 256>}, {pipeline_mode = #tpu.pipeline_mode<synchronous>, transform_indices = @transform_4, window_bounds = array<i64: 1, 256>}, {pipeline_mode = #tpu.pipeline_mode<synchronous>, transform_indices = @transform_5, window_bounds = array<i64: 256, 128>}, {pipeline_mode = #tpu.pipeline_mode<synchronous>, transform_indices = @transform_6, window_bounds = array<i64: 1, 128>}, {transform_indices = @transform_7, window_bounds = array<i64: 8, 128>}]} {
    %c0 = arith.constant 0 : index
    %c0_0 = arith.constant 0 : index
    %0 = vector.load %arg1[%c0, %c0_0] : memref<8x1024xbf16, #tpu.memory_space<vmem>>, vector<8x1024xbf16>
    %c0_1 = arith.constant 0 : index
    %c0_2 = arith.constant 0 : index
    %1 = vector.load %arg2[%c0_1, %c0_2] : memref<1024x512xbf16, #tpu.memory_space<vmem>>, vector<1024x512xbf16>
    %cst = arith.constant dense<0.000000e+00> : vector<8x512xf32>
    %2 = tpu.matmul %0, %1, %cst {dimension_numbers = #tpu.dot_dimension_numbers<[1], [0], [0], [1], [0, 0, 1, 1], [], []>} : vector<8x1024xbf16>, vector<1024x512xbf16>, vector<8x512xf32> -> vector<8x512xf32>
    %c0_3 = arith.constant 0 : index
    %c0_4 = arith.constant 0 : index
    %3 = vector.load %arg3[%c0_3, %c0_4] : memref<1x512xf32, #tpu.memory_space<vmem>>, vector<1x512xf32>
    %4 = vector.broadcast %3 : vector<1x512xf32> to vector<8x512xf32>
    %5 = arith.addf %2, %4 : vector<8x512xf32>
    %cst_5 = arith.constant 0.000000e+00 : f32
    %6 = vector.broadcast %cst_5 : f32 to vector<8x512xf32>
    %7 = arith.cmpf ogt, %5, %6 : vector<8x512xf32>
    %cst_6 = arith.constant 2.000000e-01 : f32
    %8 = vector.broadcast %cst_6 : f32 to vector<8x512xf32>
    %9 = arith.mulf %8, %5 : vector<8x512xf32>
    %10 = arith.select %7, %5, %9 : vector<8x512xi1>, vector<8x512xf32>
    %c0_7 = arith.constant 0 : index
    %c0_8 = arith.constant 0 : index
    %11 = vector.load %arg4[%c0_7, %c0_8] : memref<512x256xf32, #tpu.memory_space<vmem>>, vector<512x256xf32>
    %cst_9 = arith.constant dense<0.000000e+00> : vector<8x256xf32>
    %12 = tpu.matmul %10, %11, %cst_9 {dimension_numbers = #tpu.dot_dimension_numbers<[1], [0], [0], [1], [0, 0, 1, 1], [], []>} : vector<8x512xf32>, vector<512x256xf32>, vector<8x256xf32> -> vector<8x256xf32>
    %c0_10 = arith.constant 0 : index
    %c0_11 = arith.constant 0 : index
    %13 = vector.load %arg5[%c0_10, %c0_11] : memref<1x256xf32, #tpu.memory_space<vmem>>, vector<1x256xf32>
    %14 = vector.broadcast %13 : vector<1x256xf32> to vector<8x256xf32>
    %15 = arith.addf %12, %14 : vector<8x256xf32>
    %cst_12 = arith.constant 0.000000e+00 : f32
    %16 = vector.broadcast %cst_12 : f32 to vector<8x256xf32>
    %17 = arith.cmpf ogt, %15, %16 : vector<8x256xf32>
    %cst_13 = arith.constant 2.000000e-01 : f32
    %18 = vector.broadcast %cst_13 : f32 to vector<8x256xf32>
    %19 = arith.mulf %18, %15 : vector<8x256xf32>
    %20 = arith.select %17, %15, %19 : vector<8x256xi1>, vector<8x256xf32>
    %c0_14 = arith.constant 0 : index
    %c0_15 = arith.constant 0 : index
    %21 = vector.load %arg6[%c0_14, %c0_15] : memref<256x128xf32, #tpu.memory_space<vmem>>, vector<256x128xf32>
    %cst_16 = arith.constant dense<0.000000e+00> : vector<8x128xf32>
    %22 = tpu.matmul %20, %21, %cst_16 {dimension_numbers = #tpu.dot_dimension_numbers<[1], [0], [0], [1], [0, 0, 1, 1], [], []>} : vector<8x256xf32>, vector<256x128xf32>, vector<8x128xf32> -> vector<8x128xf32>
    %c0_17 = arith.constant 0 : index
    %c0_18 = arith.constant 0 : index
    %23 = vector.load %arg7[%c0_17, %c0_18] : memref<1x128xf32, #tpu.memory_space<vmem>>, vector<1x128xf32>
    %24 = vector.broadcast %23 : vector<1x128xf32> to vector<8x128xf32>
    %25 = arith.addf %22, %24 : vector<8x128xf32>
    %26 = arith.negf %25 : vector<8x128xf32>
    %27 = math.exp %26 : vector<8x128xf32>
    %cst_19 = arith.constant 1.000000e+00 : f32
    %28 = vector.broadcast %cst_19 : f32 to vector<8x128xf32>
    %29 = arith.addf %28, %27 : vector<8x128xf32>
    %30 = arith.divf %28, %29 : vector<8x128xf32>
    %c0_20 = arith.constant 0 : index
    %c0_21 = arith.constant 0 : index
    %31 = vector.load %arg8[%c0_20, %c0_21] : memref<8x128xf32, #tpu.memory_space<vmem>>, vector<8x128xf32>
    tpu.vector_store %arg8[%c0_20, %c0_21], %30 {strides = array<i32>} : memref<8x128xf32, #tpu.memory_space<vmem>>, vector<8x128xf32>,
    return
  }
  func.func @transform_0(%arg0: i32) -> (i32, i32) {
    %c0_i32 = arith.constant 0 : i32
    %c0_i32_0 = arith.constant 0 : i32
    return %arg0, %c0_i32 : i32, i32
  }
  func.func @transform_1(%arg0: i32) -> (i32, i32) {
    %c0_i32 = arith.constant 0 : i32
    %c0_i32_0 = arith.constant 0 : i32
    %c0_i32_1 = arith.constant 0 : i32
    return %c0_i32, %c0_i32_0 : i32, i32
  }
  func.func @transform_2(%arg0: i32) -> (i32, i32) {
    %c0_i32 = arith.constant 0 : i32
    %c0_i32_0 = arith.constant 0 : i32
    %c0_i32_1 = arith.constant 0 : i32
    return %c0_i32, %c0_i32_0 : i32, i32
  }
  func.func @transform_3(%arg0: i32) -> (i32, i32) {
    %c0_i32 = arith.constant 0 : i32
    %c0_i32_0 = arith.constant 0 : i32
    %c0_i32_1 = arith.constant 0 : i32
    return %c0_i32, %c0_i32_0 : i32, i32
  }
  func.func @transform_4(%arg0: i32) -> (i32, i32) {
    %c0_i32 = arith.constant 0 : i32
    %c0_i32_0 = arith.constant 0 : i32
    %c0_i32_1 = arith.constant 0 : i32
    return %c0_i32, %c0_i32_0 : i32, i32
  }
  func.func @transform_5(%arg0: i32) -> (i32, i32) {
    %c0_i32 = arith.constant 0 : i32
    %c0_i32_0 = arith.constant 0 : i32
    %c0_i32_1 = arith.constant 0 : i32
    return %c0_i32, %c0_i32_0 : i32, i32
  }
  func.func @transform_6(%arg0: i32) -> (i32, i32) {
    %c0_i32 = arith.constant 0 : i32
    %c0_i32_0 = arith.constant 0 : i32
    %c0_i32_1 = arith.constant 0 : i32
    return %c0_i32, %c0_i32_0 : i32, i32
  }
  func.func @transform_7(%arg0: i32) -> (i32, i32) {
    %c0_i32 = arith.constant 0 : i32
    %c0_i32_0 = arith.constant 0 : i32
    return %arg0, %c0_i32 : i32, i32
  }
}

</mosaic_0001>

<llo_original>
// kernel: tpu_custom_call.1
$region0: #{tpu_custom_call.1}
  #allocation0 [shape = 'u32[]', space=smem, size = 0x4, offset = 0x4, fixed_abs, tag = 'smem constant byte address 0x4 - core index']
  #allocation1 [shape = 'u32[144,128]{1,0:T(1,128)}', space=vmem, size = 0x12000, scoped, tag = 'internal scratch']
  %s0 = inlined_call_operand.hbm [shape: bf16[8,1024], index: 0, kind: input, shape index: {}]
  %s1 = inlined_call_operand.hbm [shape: bf16[1024,512], index: 1, kind: input, shape index: {}]
  %s2 = inlined_call_operand.hbm [shape: f32[1,512], index: 2, kind: input, shape index: {}]
  %s3 = inlined_call_operand.hbm [shape: f32[512,256], index: 3, kind: input, shape index: {}]
  %s4 = inlined_call_operand.vmem [shape: f32[1,256], index: 4, kind: input, shape index: {}]
  %s5 = inlined_call_operand.hbm [shape: f32[256,128], index: 5, kind: input, shape index: {}]
  %s6 = inlined_call_operand.vmem [shape: f32[1,128], index: 6, kind: input, shape index: {}]
  %s7 = inlined_call_operand.hbm [shape: f32[8,128], index: 7, kind: output, shape index: {}]
  %s8 = sld [smem:[#allocation0]]
  $region58: #{tpu_custom_call.1} parent=0
    _
  %s10 = ssub.s32 1, %s8
  %s11 = scalar_select 0, %s10, %s8
  $region1: #{tpu_custom_call.1} parent=0
    #allocation2 [shape = 'u8[16384]{0}', space=vmem, size = 0x4000, scoped, tag = 'input window, operand 0, single buffered']
    #allocation3 [shape = 's32[1]{0}', space=sflag, size = 0x4, scoped, tag = 'scoped memory for tpu_custom_call.1']
    #allocation4 [shape = 's32[1]{0}', space=sflag, size = 0x4, scoped, tag = 'scoped memory for tpu_custom_call.1']
    #allocation5 [shape = 'u8[1048576]{0}', space=vmem, size = 0x100000, scoped, tag = 'input window, operand 1, single buffered']
    #allocation6 [shape = 's32[1]{0}', space=sflag, size = 0x4, scoped, tag = 'scoped memory for tpu_custom_call.1']
    #allocation7 [shape = 'u8[2048]{0}', space=vmem, size = 0x800, scoped, tag = 'input window, operand 2, single buffered']
    #allocation8 [shape = 'u8[524288]{0}', space=vmem, size = 0x80000, scoped, tag = 'input window, operand 3, single buffered']
    #allocation9 [shape = 's32[1]{0}', space=sflag, size = 0x4, scoped, tag = 'scoped memory for tpu_custom_call.1']
    #allocation10 [shape = 'u8[131072]{0}', space=vmem, size = 0x20000, scoped, tag = 'input window, operand 5, single buffered']
    #allocation11 [shape = 'u8[4096]{0}', space=vmem, size = 0x1000, scoped, tag = 'output window, operand 0, single buffered']
    %12 = vsyncpa [#allocation3], 0
    %13 = vsyncpa [#allocation6], 0
    %14 = vsyncpa [#allocation9], 0
    %15 = vsyncpa [#allocation4], 0
    // Predicated region
    $region2: #{tpu_custom_call.1} parent=1 // pred_check
      _
    $region3: #{tpu_custom_call.1} parent=1 // pred_check_branch
      %17 = sbr.rel (0) target = $region5
    $region4: #{tpu_custom_call.1} parent=1 // pred_region
      %s19 = ssub.s32 512, 512
      %20 = vsyncadd [#allocation3], %s19
      %s22 = sshll.u32 [#allocation2], 4
      %s23 = int_to_ptr.vmem [resolvable:$true] %s22
      %25 = dma.hbm_to_vmem [thread:$0]  %s0, 512, %s23, [#allocation3]
    $region5: #{tpu_custom_call.1} parent=1 // pred_fallthru
      _
    // Predicated region
    $region6: #{tpu_custom_call.1} parent=1 // pred_check
      _
    $region7: #{tpu_custom_call.1} parent=1 // pred_check_branch
      %27 = sbr.rel (0) target = $region9
    $region8: #{tpu_custom_call.1} parent=1 // pred_region
      %s29 = ssub.s32 32768, 32768
      %30 = vsyncadd [#allocation6], %s29
      %s31 = sshll.u32 [#allocation5], 4
      %s32 = int_to_ptr.vmem [resolvable:$true] %s31
      %37 = dma.hbm_to_vmem [thread:$0]  %s1, 32768, %s32, [#allocation6], 256, 256, 16
    $region9: #{tpu_custom_call.1} parent=1 // pred_fallthru
      _
    // Predicated region
    $region10: #{tpu_custom_call.1} parent=1 // pred_check
      _
    $region11: #{tpu_custom_call.1} parent=1 // pred_check_branch
      %39 = sbr.rel (0) target = $region13
    $region12: #{tpu_custom_call.1} parent=1 // pred_region
      %s41 = ssub.s32 64, 64
      %42 = vsyncadd [#allocation6], %s41
      %s44 = sshll.u32 [#allocation7], 4
      %s45 = int_to_ptr.vmem [resolvable:$true] %s44
      %47 = dma.hbm_to_vmem [thread:$0]  %s2, 64, %s45, [#allocation6]
    $region13: #{tpu_custom_call.1} parent=1 // pred_fallthru
      _
    // Predicated region
    $region14: #{tpu_custom_call.1} parent=1 // pred_check
      _
    $region15: #{tpu_custom_call.1} parent=1 // pred_check_branch
      %49 = sbr.rel (0) target = $region17
    $region16: #{tpu_custom_call.1} parent=1 // pred_region
      %s51 = ssub.s32 16384, 16384
      %52 = vsyncadd [#allocation9], %s51
      %s53 = sshll.u32 [#allocation8], 4
      %s54 = int_to_ptr.vmem [resolvable:$true] %s53
      %59 = dma.hbm_to_vmem [thread:$0]  %s3, 16384, %s54, [#allocation9], 256, 256, 16
    $region17: #{tpu_custom_call.1} parent=1 // pred_fallthru
      _
    // Predicated region
    $region18: #{tpu_custom_call.1} parent=1 // pred_check
      _
    $region19: #{tpu_custom_call.1} parent=1 // pred_check_branch
      %61 = sbr.rel (0) target = $region21
    $region20: #{tpu_custom_call.1} parent=1 // pred_region
      _
    $region21: #{tpu_custom_call.1} parent=1 // pred_fallthru
      _
    // Predicated region
    $region22: #{tpu_custom_call.1} parent=1 // pred_check
      _
    $region23: #{tpu_custom_call.1} parent=1 // pred_check_branch
      %63 = sbr.rel (0) target = $region25
    $region24: #{tpu_custom_call.1} parent=1 // pred_region
      %s65 = ssub.s32 4096, 4096
      %66 = vsyncadd [#allocation9], %s65
      %s67 = sshll.u32 [#allocation10], 4
      %s68 = int_to_ptr.vmem [resolvable:$true] %s67
      %73 = dma.hbm_to_vmem [thread:$0]  %s5, 4096, %s68, [#allocation9], 128, 128, 8
    $region25: #{tpu_custom_call.1} parent=1 // pred_fallthru
      _
    // Predicated region
    $region26: #{tpu_custom_call.1} parent=1 // pred_check
      _
    $region27: #{tpu_custom_call.1} parent=1 // pred_check_branch
      %75 = sbr.rel (0) target = $region29
    $region28: #{tpu_custom_call.1} parent=1 // pred_region
      _
    $region29: #{tpu_custom_call.1} parent=1 // pred_fallthru
      _
    // Predicated region
    $region30: #{tpu_custom_call.1} parent=1 // pred_check
      _
    $region31: #{tpu_custom_call.1} parent=1 // pred_check_branch
      %77 = sbr.rel (0) target = $region33
    $region32: #{tpu_custom_call.1} parent=1 // pred_region
      %78 = dma.done [#allocation3], 512
    $region33: #{tpu_custom_call.1} parent=1 // pred_fallthru
      _
    // Predicated region
    $region34: #{tpu_custom_call.1} parent=1 // pred_check
      _
    $region35: #{tpu_custom_call.1} parent=1 // pred_check_branch
      %80 = sbr.rel (0) target = $region37
    $region36: #{tpu_custom_call.1} parent=1 // pred_region
      %81 = dma.done [#allocation6], 32768
    $region37: #{tpu_custom_call.1} parent=1 // pred_fallthru
      _
    // Predicated region
    $region38: #{tpu_custom_call.1} parent=1 // pred_check
      _
    $region39: #{tpu_custom_call.1} parent=1 // pred_check_branch
      %83 = sbr.rel (0) target = $region41
    $region40: #{tpu_custom_call.1} parent=1 // pred_region
      %84 = dma.done [#allocation6], 64
    $region41: #{tpu_custom_call.1} parent=1 // pred_fallthru
      _
    // Predicated region
    $region42: #{tpu_custom_call.1} parent=1 // pred_check
      _
    $region43: #{tpu_custom_call.1} parent=1 // pred_check_branch
      %86 = sbr.rel (0) target = $region45
    $region44: #{tpu_custom_call.1} parent=1 // pred_region
      %87 = dma.done [#allocation9], 16384
    $region45: #{tpu_custom_call.1} parent=1 // pred_fallthru
      _
    // Predicated region
    $region46: #{tpu_custom_call.1} parent=1 // pred_check
      _
    $region47: #{tpu_custom_call.1} parent=1 // pred_check_branch
      %89 = sbr.rel (0) target = $region49
    $region48: #{tpu_custom_call.1} parent=1 // pred_region
      %90 = dma.done [#allocation9], 4096
    $region49: #{tpu_custom_call.1} parent=1 // pred_fallthru
      _
    %v91 = vld [vmem:[#allocation2] sm:$0xff]
    %v92 = vld [vmem:[#allocation2 + $0x8] sm:$0xff]
    %v93 = vld [vmem:[#allocation2 + $0x10] sm:$0xff]
    %v94 = vld [vmem:[#allocation2 + $0x18] sm:$0xff]
    %v95 = vld [vmem:[#allocation5] sm:$0xff]
    %v96 = vld [vmem:[#allocation5 + $0x8] sm:$0xff]
    %v97 = vld [vmem:[#allocation5 + $0x10] sm:$0xff]
    %v98 = vld [vmem:[#allocation5 + $0x18] sm:$0xff]
    %v99 = vld [vmem:[#allocation5 + $0x20] sm:$0xff]
    %v100 = vld [vmem:[#allocation5 + $0x28] sm:$0xff]
    %v101 = vld [vmem:[#allocation5 + $0x30] sm:$0xff]
    %v102 = vld [vmem:[#allocation5 + $0x38] sm:$0xff]
    %v103 = vld [vmem:[#allocation5 + $0x40] sm:$0xff]
    %v104 = vld [vmem:[#allocation5 + $0x48] sm:$0xff]
    %v105 = vld [vmem:[#allocation5 + $0x50] sm:$0xff]
    %v106 = vld [vmem:[#allocation5 + $0x58] sm:$0xff]
    %v107 = vld [vmem:[#allocation5 + $0x60] sm:$0xff]
    %v108 = vld [vmem:[#allocation5 + $0x68] sm:$0xff]
    %v109 = vld [vmem:[#allocation5 + $0x70] sm:$0xff]
    %v110 = vld [vmem:[#allocation5 + $0x78] sm:$0xff]
    %v111 = vld [vmem:[#allocation5 + $0x80] sm:$0xff]
    %v112 = vld [vmem:[#allocation5 + $0x88] sm:$0xff]
    %v113 = vld [vmem:[#allocation5 + $0x90] sm:$0xff]
    %v114 = vld [vmem:[#allocation5 + $0x98] sm:$0xff]
    %v115 = vld [vmem:[#allocation5 + $0xa0] sm:$0xff]
    %v116 = vld [vmem:[#allocation5 + $0xa8] sm:$0xff]
    %v117 = vld [vmem:[#allocation5 + $0xb0] sm:$0xff]
    %v118 = vld [vmem:[#allocation5 + $0xb8] sm:$0xff]
    %v119 = vld [vmem:[#allocation5 + $0xc0] sm:$0xff]
    %v120 = vld [vmem:[#allocation5 + $0xc8] sm:$0xff]
    %v121 = vld [vmem:[#allocation5 + $0xd0] sm:$0xff]
    %v122 = vld [vmem:[#allocation5 + $0xd8] sm:$0xff]
    %v123 = vld [vmem:[#allocation5 + $0xe0] sm:$0xff]
    %v124 = vld [vmem:[#allocation5 + $0xe8] sm:$0xff]
    %v125 = vld [vmem:[#allocation5 + $0xf0] sm:$0xff]
    %v126 = vld [vmem:[#allocation5 + $0xf8] sm:$0xff]
    %v127 = vld [vmem:[#allocation5 + $0x100] sm:$0xff]
    %v128 = vld [vmem:[#allocation5 + $0x108] sm:$0xff]
    %v129 = vld [vmem:[#allocation5 + $0x110] sm:$0xff]
    %v130 = vld [vmem:[#allocation5 + $0x118] sm:$0xff]
    %v131 = vld [vmem:[#allocation5 + $0x120] sm:$0xff]
    %v132 = vld [vmem:[#allocation5 + $0x128] sm:$0xff]
    %v133 = vld [vmem:[#allocation5 + $0x130] sm:$0xff]
    %v134 = vld [vmem:[#allocation5 + $0x138] sm:$0xff]
    %v135 = vld [vmem:[#allocation5 + $0x140] sm:$0xff]
    %v136 = vld [vmem:[#allocation5 + $0x148] sm:$0xff]
    %v137 = vld [vmem:[#allocation5 + $0x150] sm:$0xff]
    %v138 = vld [vmem:[#allocation5 + $0x158] sm:$0xff]
    %v139 = vld [vmem:[#allocation5 + $0x160] sm:$0xff]
    %v140 = vld [vmem:[#allocation5 + $0x168] sm:$0xff]
    %v141 = vld [vmem:[#allocation5 + $0x170] sm:$0xff]
    %v142 = vld [vmem:[#allocation5 + $0x178] sm:$0xff]
    %v143 = vld [vmem:[#allocation5 + $0x180] sm:$0xff]
    %v144 = vld [vmem:[#allocation5 + $0x188] sm:$0xff]
    %v145 = vld [vmem:[#allocation5 + $0x190] sm:$0xff]
    %v146 = vld [vmem:[#allocation5 + $0x198] sm:$0xff]
    %v147 = vld [vmem:[#allocation5 + $0x1a0] sm:$0xff]
    %v148 = vld [vmem:[#allocation5 + $0x1a8] sm:$0xff]
    %v149 = vld [vmem:[#allocation5 + $0x1b0] sm:$0xff]
    %v150 = vld [vmem:[#allocation5 + $0x1b8] sm:$0xff]
    %v151 = vld [vmem:[#allocation5 + $0x1c0] sm:$0xff]
    %v152 = vld [vmem:[#allocation5 + $0x1c8] sm:$0xff]
    %v153 = vld [vmem:[#allocation5 + $0x1d0] sm:$0xff]
    %v154 = vld [vmem:[#allocation5 + $0x1d8] sm:$0xff]
    %v155 = vld [vmem:[#allocation5 + $0x1e0] sm:$0xff]
    %v156 = vld [vmem:[#allocation5 + $0x1e8] sm:$0xff]
    %v157 = vld [vmem:[#allocation5 + $0x1f0] sm:$0xff]
    %v158 = vld [vmem:[#allocation5 + $0x1f8] sm:$0xff]
    %v159 = vld [vmem:[#allocation5 + $0x200] sm:$0xff]
    %v160 = vld [vmem:[#allocation5 + $0x208] sm:$0xff]
    %v161 = vld [vmem:[#allocation5 + $0x210] sm:$0xff]
    %v162 = vld [vmem:[#allocation5 + $0x218] sm:$0xff]
    %v163 = vld [vmem:[#allocation5 + $0x220] sm:$0xff]
    %v164 = vld [vmem:[#allocation5 + $0x228] sm:$0xff]
    %v165 = vld [vmem:[#allocation5 + $0x230] sm:$0xff]
    %v166 = vld [vmem:[#allocation5 + $0x238] sm:$0xff]
    %v167 = vld [vmem:[#allocation5 + $0x240] sm:$0xff]
    %v168 = vld [vmem:[#allocation5 + $0x248] sm:$0xff]
    %v169 = vld [vmem:[#allocation5 + $0x250] sm:$0xff]
    %v170 = vld [vmem:[#allocation5 + $0x258] sm:$0xff]
    %v171 = vld [vmem:[#allocation5 + $0x260] sm:$0xff]
    %v172 = vld [vmem:[#allocation5 + $0x268] sm:$0xff]
    %v173 = vld [vmem:[#allocation5 + $0x270] sm:$0xff]
    %v174 = vld [vmem:[#allocation5 + $0x278] sm:$0xff]
    %v175 = vld [vmem:[#allocation5 + $0x280] sm:$0xff]
    %v176 = vld [vmem:[#allocation5 + $0x288] sm:$0xff]
    %v177 = vld [vmem:[#allocation5 + $0x290] sm:$0xff]
    %v178 = vld [vmem:[#allocation5 + $0x298] sm:$0xff]
    %v179 = vld [vmem:[#allocation5 + $0x2a0] sm:$0xff]
    %v180 = vld [vmem:[#allocation5 + $0x2a8] sm:$0xff]
    %v181 = vld [vmem:[#allocation5 + $0x2b0] sm:$0xff]
    %v182 = vld [vmem:[#allocation5 + $0x2b8] sm:$0xff]
    %v183 = vld [vmem:[#allocation5 + $0x2c0] sm:$0xff]
    %v184 = vld [vmem:[#allocation5 + $0x2c8] sm:$0xff]
    %v185 = vld [vmem:[#allocation5 + $0x2d0] sm:$0xff]
    %v186 = vld [vmem:[#allocation5 + $0x2d8] sm:$0xff]
    %v187 = vld [vmem:[#allocation5 + $0x2e0] sm:$0xff]
    %v188 = vld [vmem:[#allocation5 + $0x2e8] sm:$0xff]
    %v189 = vld [vmem:[#allocation5 + $0x2f0] sm:$0xff]
    %v190 = vld [vmem:[#allocation5 + $0x2f8] sm:$0xff]
    %v191 = vld [vmem:[#allocation5 + $0x300] sm:$0xff]
    %v192 = vld [vmem:[#allocation5 + $0x308] sm:$0xff]
    %v193 = vld [vmem:[#allocation5 + $0x310] sm:$0xff]
    %v194 = vld [vmem:[#allocation5 + $0x318] sm:$0xff]
    %v195 = vld [vmem:[#allocation5 + $0x320] sm:$0xff]
    %v196 = vld [vmem:[#allocation5 + $0x328] sm:$0xff]
    %v197 = vld [vmem:[#allocation5 + $0x330] sm:$0xff]
    %v198 = vld [vmem:[#allocation5 + $0x338] sm:$0xff]
    %v199 = vld [vmem:[#allocation5 + $0x340] sm:$0xff]
    %v200 = vld [vmem:[#allocation5 + $0x348] sm:$0xff]
    %v201 = vld [vmem:[#allocation5 + $0x350] sm:$0xff]
    %v202 = vld [vmem:[#allocation5 + $0x358] sm:$0xff]
    %v203 = vld [vmem:[#allocation5 + $0x360] sm:$0xff]
    %v204 = vld [vmem:[#allocation5 + $0x368] sm:$0xff]
    %v205 = vld [vmem:[#allocation5 + $0x370] sm:$0xff]
    %v206 = vld [vmem:[#allocation5 + $0x378] sm:$0xff]
    %v207 = vld [vmem:[#allocation5 + $0x380] sm:$0xff]
    %v208 = vld [vmem:[#allocation5 + $0x388] sm:$0xff]
    %v209 = vld [vmem:[#allocation5 + $0x390] sm:$0xff]
    %v210 = vld [vmem:[#allocation5 + $0x398] sm:$0xff]
    %v211 = vld [vmem:[#allocation5 + $0x3a0] sm:$0xff]
    %v212 = vld [vmem:[#allocation5 + $0x3a8] sm:$0xff]
    %v213 = vld [vmem:[#allocation5 + $0x3b0] sm:$0xff]
    %v214 = vld [vmem:[#allocation5 + $0x3b8] sm:$0xff]
    %v215 = vld [vmem:[#allocation5 + $0x3c0] sm:$0xff]
    %v216 = vld [vmem:[#allocation5 + $0x3c8] sm:$0xff]
    %v217 = vld [vmem:[#allocation5 + $0x3d0] sm:$0xff]
    %v218 = vld [vmem:[#allocation5 + $0x3d8] sm:$0xff]
    %v219 = vld [vmem:[#allocation5 + $0x3e0] sm:$0xff]
    %v220 = vld [vmem:[#allocation5 + $0x3e8] sm:$0xff]
    %v221 = vld [vmem:[#allocation5 + $0x3f0] sm:$0xff]
    %v222 = vld [vmem:[#allocation5 + $0x3f8] sm:$0xff]
    %v223 = vld [vmem:[#allocation5 + $0x400] sm:$0xff]
    %v224 = vld [vmem:[#allocation5 + $0x408] sm:$0xff]
    %v225 = vld [vmem:[#allocation5 + $0x410] sm:$0xff]
    %v226 = vld [vmem:[#allocation5 + $0x418] sm:$0xff]
    %v227 = vld [vmem:[#allocation5 + $0x420] sm:$0xff]
    %v228 = vld [vmem:[#allocation5 + $0x428] sm:$0xff]
    %v229 = vld [vmem:[#allocation5 + $0x430] sm:$0xff]
    %v230 = vld [vmem:[#allocation5 + $0x438] sm:$0xff]
    %v231 = vld [vmem:[#allocation5 + $0x440] sm:$0xff]
    %v232 = vld [vmem:[#allocation5 + $0x448] sm:$0xff]
    %v233 = vld [vmem:[#allocation5 + $0x450] sm:$0xff]
    %v234 = vld [vmem:[#allocation5 + $0x458] sm:$0xff]
    %v235 = vld [vmem:[#allocation5 + $0x460] sm:$0xff]
    %v236 = vld [vmem:[#allocation5 + $0x468] sm:$0xff]
    %v237 = vld [vmem:[#allocation5 + $0x470] sm:$0xff]
    %v238 = vld [vmem:[#allocation5 + $0x478] sm:$0xff]
    %v239 = vld [vmem:[#allocation5 + $0x480] sm:$0xff]
    %v240 = vld [vmem:[#allocation5 + $0x488] sm:$0xff]
    %v241 = vld [vmem:[#allocation5 + $0x490] sm:$0xff]
    %v242 = vld [vmem:[#allocation5 + $0x498] sm:$0xff]
    %v243 = vld [vmem:[#allocation5 + $0x4a0] sm:$0xff]
    %v244 = vld [vmem:[#allocation5 + $0x4a8] sm:$0xff]
    %v245 = vld [vmem:[#allocation5 + $0x4b0] sm:$0xff]
    %v246 = vld [vmem:[#allocation5 + $0x4b8] sm:$0xff]
    %v247 = vld [vmem:[#allocation5 + $0x4c0] sm:$0xff]
    %v248 = vld [vmem:[#allocation5 + $0x4c8] sm:$0xff]
    %v249 = vld [vmem:[#allocation5 + $0x4d0] sm:$0xff]
    %v250 = vld [vmem:[#allocation5 + $0x4d8] sm:$0xff]
    %v251 = vld [vmem:[#allocation5 + $0x4e0] sm:$0xff]
    %v252 = vld [vmem:[#allocation5 + $0x4e8] sm:$0xff]
    %v253 = vld [vmem:[#allocation5 + $0x4f0] sm:$0xff]
    %v254 = vld [vmem:[#allocation5 + $0x4f8] sm:$0xff]
    %v255 = vld [vmem:[#allocation5 + $0x500] sm:$0xff]
    %v256 = vld [vmem:[#allocation5 + $0x508] sm:$0xff]
    %v257 = vld [vmem:[#allocation5 + $0x510] sm:$0xff]
    %v258 = vld [vmem:[#allocation5 + $0x518] sm:$0xff]
    %v259 = vld [vmem:[#allocation5 + $0x520] sm:$0xff]
    %v260 = vld [vmem:[#allocation5 + $0x528] sm:$0xff]
    %v261 = vld [vmem:[#allocation5 + $0x530] sm:$0xff]
    %v262 = vld [vmem:[#allocation5 + $0x538] sm:$0xff]
    %v263 = vld [vmem:[#allocation5 + $0x540] sm:$0xff]
    %v264 = vld [vmem:[#allocation5 + $0x548] sm:$0xff]
    %v265 = vld [vmem:[#allocation5 + $0x550] sm:$0xff]
    %v266 = vld [vmem:[#allocation5 + $0x558] sm:$0xff]
    %v267 = vld [vmem:[#allocation5 + $0x560] sm:$0xff]
    %v268 = vld [vmem:[#allocation5 + $0x568] sm:$0xff]
    %v269 = vld [vmem:[#allocation5 + $0x570] sm:$0xff]
    %v270 = vld [vmem:[#allocation5 + $0x578] sm:$0xff]
    %v271 = vld [vmem:[#allocation5 + $0x580] sm:$0xff]
    %v272 = vld [vmem:[#allocation5 + $0x588] sm:$0xff]
    %v273 = vld [vmem:[#allocation5 + $0x590] sm:$0xff]
    %v274 = vld [vmem:[#allocation5 + $0x598] sm:$0xff]
    %v275 = vld [vmem:[#allocation5 + $0x5a0] sm:$0xff]
    %v276 = vld [vmem:[#allocation5 + $0x5a8] sm:$0xff]
    %v277 = vld [vmem:[#allocation5 + $0x5b0] sm:$0xff]
    %v278 = vld [vmem:[#allocation5 + $0x5b8] sm:$0xff]
    %v279 = vld [vmem:[#allocation5 + $0x5c0] sm:$0xff]
    %v280 = vld [vmem:[#allocation5 + $0x5c8] sm:$0xff]
    %v281 = vld [vmem:[#allocation5 + $0x5d0] sm:$0xff]
    %v282 = vld [vmem:[#allocation5 + $0x5d8] sm:$0xff]
    %v283 = vld [vmem:[#allocation5 + $0x5e0] sm:$0xff]
    %v284 = vld [vmem:[#allocation5 + $0x5e8] sm:$0xff]
    %v285 = vld [vmem:[#allocation5 + $0x5f0] sm:$0xff]
    %v286 = vld [vmem:[#allocation5 + $0x5f8] sm:$0xff]
    %v287 = vld [vmem:[#allocation5 + $0x600] sm:$0xff]
    %v288 = vld [vmem:[#allocation5 + $0x608] sm:$0xff]
    %v289 = vld [vmem:[#allocation5 + $0x610] sm:$0xff]
    %v290 = vld [vmem:[#allocation5 + $0x618] sm:$0xff]
    %v291 = vld [vmem:[#allocation5 + $0x620] sm:$0xff]
    %v292 = vld [vmem:[#allocation5 + $0x628] sm:$0xff]
    %v293 = vld [vmem:[#allocation5 + $0x630] sm:$0xff]
    %v294 = vld [vmem:[#allocation5 + $0x638] sm:$0xff]
    %v295 = vld [vmem:[#allocation5 + $0x640] sm:$0xff]
    %v296 = vld [vmem:[#allocation5 + $0x648] sm:$0xff]
    %v297 = vld [vmem:[#allocation5 + $0x650] sm:$0xff]
    %v298 = vld [vmem:[#allocation5 + $0x658] sm:$0xff]
    %v299 = vld [vmem:[#allocation5 + $0x660] sm:$0xff]
    %v300 = vld [vmem:[#allocation5 + $0x668] sm:$0xff]
    %v301 = vld [vmem:[#allocation5 + $0x670] sm:$0xff]
    %v302 = vld [vmem:[#allocation5 + $0x678] sm:$0xff]
    %v303 = vld [vmem:[#allocation5 + $0x680] sm:$0xff]
    %v304 = vld [vmem:[#allocation5 + $0x688] sm:$0xff]
    %v305 = vld [vmem:[#allocation5 + $0x690] sm:$0xff]
    %v306 = vld [vmem:[#allocation5 + $0x698] sm:$0xff]
    %v307 = vld [vmem:[#allocation5 + $0x6a0] sm:$0xff]
    %v308 = vld [vmem:[#allocation5 + $0x6a8] sm:$0xff]
    %v309 = vld [vmem:[#allocation5 + $0x6b0] sm:$0xff]
    %v310 = vld [vmem:[#allocation5 + $0x6b8] sm:$0xff]
    %v311 = vld [vmem:[#allocation5 + $0x6c0] sm:$0xff]
    %v312 = vld [vmem:[#allocation5 + $0x6c8] sm:$0xff]
    %v313 = vld [vmem:[#allocation5 + $0x6d0] sm:$0xff]
    %v314 = vld [vmem:[#allocation5 + $0x6d8] sm:$0xff]
    %v315 = vld [vmem:[#allocation5 + $0x6e0] sm:$0xff]
    %v316 = vld [vmem:[#allocation5 + $0x6e8] sm:$0xff]
    %v317 = vld [vmem:[#allocation5 + $0x6f0] sm:$0xff]
    %v318 = vld [vmem:[#allocation5 + $0x6f8] sm:$0xff]
    %v319 = vld [vmem:[#allocation5 + $0x700] sm:$0xff]
    %v320 = vld [vmem:[#allocation5 + $0x708] sm:$0xff]
    %v321 = vld [vmem:[#allocation5 + $0x710] sm:$0xff]
    %v322 = vld [vmem:[#allocation5 + $0x718] sm:$0xff]
    %v323 = vld [vmem:[#allocation5 + $0x720] sm:$0xff]
    %v324 = vld [vmem:[#allocation5 + $0x728] sm:$0xff]
    %v325 = vld [vmem:[#allocation5 + $0x730] sm:$0xff]
    %v326 = vld [vmem:[#allocation5 + $0x738] sm:$0xff]
    %v327 = vld [vmem:[#allocation5 + $0x740] sm:$0xff]
    %v328 = vld [vmem:[#allocation5 + $0x748] sm:$0xff]
    %v329 = vld [vmem:[#allocation5 + $0x750] sm:$0xff]
    %v330 = vld [vmem:[#allocation5 + $0x758] sm:$0xff]
    %v331 = vld [vmem:[#allocation5 + $0x760] sm:$0xff]
    %v332 = vld [vmem:[#allocation5 + $0x768] sm:$0xff]
    %v333 = vld [vmem:[#allocation5 + $0x770] sm:$0xff]
    %v334 = vld [vmem:[#allocation5 + $0x778] sm:$0xff]
    %v335 = vld [vmem:[#allocation5 + $0x780] sm:$0xff]
    %v336 = vld [vmem:[#allocation5 + $0x788] sm:$0xff]
    %v337 = vld [vmem:[#allocation5 + $0x790] sm:$0xff]
    %v338 = vld [vmem:[#allocation5 + $0x798] sm:$0xff]
    %v339 = vld [vmem:[#allocation5 + $0x7a0] sm:$0xff]
    %v340 = vld [vmem:[#allocation5 + $0x7a8] sm:$0xff]
    %v341 = vld [vmem:[#allocation5 + $0x7b0] sm:$0xff]
    %v342 = vld [vmem:[#allocation5 + $0x7b8] sm:$0xff]
    %v343 = vld [vmem:[#allocation5 + $0x7c0] sm:$0xff]
    %v344 = vld [vmem:[#allocation5 + $0x7c8] sm:$0xff]
    %v345 = vld [vmem:[#allocation5 + $0x7d0] sm:$0xff]
    %v346 = vld [vmem:[#allocation5 + $0x7d8] sm:$0xff]
    %v347 = vld [vmem:[#allocation5 + $0x7e0] sm:$0xff]
    %v348 = vld [vmem:[#allocation5 + $0x7e8] sm:$0xff]
    %v349 = vld [vmem:[#allocation5 + $0x7f0] sm:$0xff]
    %v350 = vld [vmem:[#allocation5 + $0x7f8] sm:$0xff]
    %v351 = vld [vmem:[#allocation7] sm:$0xf]
    %v353 = vlaneseq
    %v354 = vshrl.u32 %v353, 7
    %v355 = vsub.s32 0, %v354
    %v356 = vrot.slane %v351, %v355
    %v357 = vlaneseq
    %v358 = vshrl.u32 %v357, 7
    %v359 = vsub.s32 1, %v358
    %v360 = vrot.slane %v351, %v359
    %v361 = vlaneseq
    %v362 = vshrl.u32 %v361, 7
    %v363 = vsub.s32 2, %v362
    %v364 = vrot.slane %v351, %v363
    %v365 = vlaneseq
    %v366 = vshrl.u32 %v365, 7
    %v367 = vsub.s32 3, %v366
    %v368 = vrot.slane %v351, %v367
    %v377 = vunpack.c.l.b16 %v91
    %v378 = vunpack.c.h.b16 %v91
    %v379 = vunpack.c.l.b16 %v92
    %v380 = vunpack.c.h.b16 %v92
    %v381 = vunpack.c.l.b16 %v93
    %v382 = vunpack.c.h.b16 %v93
    %v383 = vunpack.c.l.b16 %v94
    %v384 = vunpack.c.h.b16 %v94
    %v385 = vpack.c.b16 %v377, %v377
    %v386 = vpack.c.b16 %v378, %v378
    %v387 = vpack.c.b16 %v379, %v379
    %v388 = vpack.c.b16 %v380, %v380
    %v389 = vpack.c.b16 %v381, %v381
    %v390 = vpack.c.b16 %v382, %v382
    %v391 = vpack.c.b16 %v383, %v383
    %v392 = vpack.c.b16 %v384, %v384
    %v657 = vunpack.c.l.b16 %v95
    %v658 = vunpack.c.h.b16 %v95
    %v659 = vunpack.c.l.b16 %v96
    %v660 = vunpack.c.h.b16 %v96
    %v661 = vunpack.c.l.b16 %v97
    %v662 = vunpack.c.h.b16 %v97
    %v663 = vunpack.c.l.b16 %v98
    %v664 = vunpack.c.h.b16 %v98
    %v665 = vunpack.c.l.b16 %v99
    %v666 = vunpack.c.h.b16 %v99
    %v667 = vunpack.c.l.b16 %v100
    %v668 = vunpack.c.h.b16 %v100
    %v669 = vunpack.c.l.b16 %v101
    %v670 = vunpack.c.h.b16 %v101
    %v671 = vunpack.c.l.b16 %v102
    %v672 = vunpack.c.h.b16 %v102
    %v673 = vunpack.c.l.b16 %v103
    %v674 = vunpack.c.h.b16 %v103
    %v675 = vunpack.c.l.b16 %v104
    %v676 = vunpack.c.h.b16 %v104
    %v677 = vunpack.c.l.b16 %v105
    %v678 = vunpack.c.h.b16 %v105
    %v679 = vunpack.c.l.b16 %v106
    %v680 = vunpack.c.h.b16 %v106
    %v681 = vunpack.c.l.b16 %v107
    %v682 = vunpack.c.h.b16 %v107
    %v683 = vunpack.c.l.b16 %v108
    %v684 = vunpack.c.h.b16 %v108
    %v685 = vunpack.c.l.b16 %v109
    %v686 = vunpack.c.h.b16 %v109
    %v687 = vunpack.c.l.b16 %v110
    %v688 = vunpack.c.h.b16 %v110
    %v689 = vunpack.c.l.b16 %v111
    %v690 = vunpack.c.h.b16 %v111
    %v691 = vunpack.c.l.b16 %v112
    %v692 = vunpack.c.h.b16 %v112
    %v693 = vunpack.c.l.b16 %v113
    %v694 = vunpack.c.h.b16 %v113
    %v695 = vunpack.c.l.b16 %v114
    %v696 = vunpack.c.h.b16 %v114
    %v697 = vunpack.c.l.b16 %v115
    %v698 = vunpack.c.h.b16 %v115
    %v699 = vunpack.c.l.b16 %v116
    %v700 = vunpack.c.h.b16 %v116
    %v701 = vunpack.c.l.b16 %v117
    %v702 = vunpack.c.h.b16 %v117
    %v703 = vunpack.c.l.b16 %v118
    %v704 = vunpack.c.h.b16 %v118
    %v705 = vunpack.c.l.b16 %v119
    %v706 = vunpack.c.h.b16 %v119
    %v707 = vunpack.c.l.b16 %v120
    %v708 = vunpack.c.h.b16 %v120
    %v709 = vunpack.c.l.b16 %v121
    %v710 = vunpack.c.h.b16 %v121
    %v711 = vunpack.c.l.b16 %v122
    %v712 = vunpack.c.h.b16 %v122
    %v713 = vunpack.c.l.b16 %v123
    %v714 = vunpack.c.h.b16 %v123
    %v715 = vunpack.c.l.b16 %v124
    %v716 = vunpack.c.h.b16 %v124
    %v717 = vunpack.c.l.b16 %v125
    %v718 = vunpack.c.h.b16 %v125
    %v719 = vunpack.c.l.b16 %v126
    %v720 = vunpack.c.h.b16 %v126
    %v721 = vunpack.c.l.b16 %v127
    %v722 = vunpack.c.h.b16 %v127
    %v723 = vunpack.c.l.b16 %v128
    %v724 = vunpack.c.h.b16 %v128
    %v725 = vunpack.c.l.b16 %v129
    %v726 = vunpack.c.h.b16 %v129
    %v727 = vunpack.c.l.b16 %v130
    %v728 = vunpack.c.h.b16 %v130
    %v729 = vunpack.c.l.b16 %v131
    %v730 = vunpack.c.h.b16 %v131
    %v731 = vunpack.c.l.b16 %v132
    %v732 = vunpack.c.h.b16 %v132
    %v733 = vunpack.c.l.b16 %v133
    %v734 = vunpack.c.h.b16 %v133
    %v735 = vunpack.c.l.b16 %v134
    %v736 = vunpack.c.h.b16 %v134
    %v737 = vunpack.c.l.b16 %v135
    %v738 = vunpack.c.h.b16 %v135
    %v739 = vunpack.c.l.b16 %v136
    %v740 = vunpack.c.h.b16 %v136
    %v741 = vunpack.c.l.b16 %v137
    %v742 = vunpack.c.h.b16 %v137
    %v743 = vunpack.c.l.b16 %v138
    %v744 = vunpack.c.h.b16 %v138
    %v745 = vunpack.c.l.b16 %v139
    %v746 = vunpack.c.h.b16 %v139
    %v747 = vunpack.c.l.b16 %v140
    %v748 = vunpack.c.h.b16 %v140
    %v749 = vunpack.c.l.b16 %v141
    %v750 = vunpack.c.h.b16 %v141
    %v751 = vunpack.c.l.b16 %v142
    %v752 = vunpack.c.h.b16 %v142
    %v753 = vunpack.c.l.b16 %v143
    %v754 = vunpack.c.h.b16 %v143
    %v755 = vunpack.c.l.b16 %v144
    %v756 = vunpack.c.h.b16 %v144
    %v757 = vunpack.c.l.b16 %v145
    %v758 = vunpack.c.h.b16 %v145
    %v759 = vunpack.c.l.b16 %v146
    %v760 = vunpack.c.h.b16 %v146
    %v761 = vunpack.c.l.b16 %v147
    %v762 = vunpack.c.h.b16 %v147
    %v763 = vunpack.c.l.b16 %v148
    %v764 = vunpack.c.h.b16 %v148
    %v765 = vunpack.c.l.b16 %v149
    %v766 = vunpack.c.h.b16 %v149
    %v767 = vunpack.c.l.b16 %v150
    %v768 = vunpack.c.h.b16 %v150
    %v769 = vunpack.c.l.b16 %v151
    %v770 = vunpack.c.h.b16 %v151
    %v771 = vunpack.c.l.b16 %v152
    %v772 = vunpack.c.h.b16 %v152
    %v773 = vunpack.c.l.b16 %v153
    %v774 = vunpack.c.h.b16 %v153
    %v775 = vunpack.c.l.b16 %v154
    %v776 = vunpack.c.h.b16 %v154
    %v777 = vunpack.c.l.b16 %v155
    %v778 = vunpack.c.h.b16 %v155
    %v779 = vunpack.c.l.b16 %v156
    %v780 = vunpack.c.h.b16 %v156
    %v781 = vunpack.c.l.b16 %v157
    %v782 = vunpack.c.h.b16 %v157
    %v783 = vunpack.c.l.b16 %v158
    %v784 = vunpack.c.h.b16 %v158
    %v785 = vunpack.c.l.b16 %v159
    %v786 = vunpack.c.h.b16 %v159
    %v787 = vunpack.c.l.b16 %v160
    %v788 = vunpack.c.h.b16 %v160
    %v789 = vunpack.c.l.b16 %v161
    %v790 = vunpack.c.h.b16 %v161
    %v791 = vunpack.c.l.b16 %v162
    %v792 = vunpack.c.h.b16 %v162
    %v793 = vunpack.c.l.b16 %v163
    %v794 = vunpack.c.h.b16 %v163
    %v795 = vunpack.c.l.b16 %v164
    %v796 = vunpack.c.h.b16 %v164
    %v797 = vunpack.c.l.b16 %v165
    %v798 = vunpack.c.h.b16 %v165
    %v799 = vunpack.c.l.b16 %v166
    %v800 = vunpack.c.h.b16 %v166
    %v801 = vunpack.c.l.b16 %v167
    %v802 = vunpack.c.h.b16 %v167
    %v803 = vunpack.c.l.b16 %v168
    %v804 = vunpack.c.h.b16 %v168
    %v805 = vunpack.c.l.b16 %v169
    %v806 = vunpack.c.h.b16 %v169
    %v807 = vunpack.c.l.b16 %v170
    %v808 = vunpack.c.h.b16 %v170
    %v809 = vunpack.c.l.b16 %v171
    %v810 = vunpack.c.h.b16 %v171
    %v811 = vunpack.c.l.b16 %v172
    %v812 = vunpack.c.h.b16 %v172
    %v813 = vunpack.c.l.b16 %v173
    %v814 = vunpack.c.h.b16 %v173
    %v815 = vunpack.c.l.b16 %v174
    %v816 = vunpack.c.h.b16 %v174
    %v817 = vunpack.c.l.b16 %v175
    %v818 = vunpack.c.h.b16 %v175
    %v819 = vunpack.c.l.b16 %v176
    %v820 = vunpack.c.h.b16 %v176
    %v821 = vunpack.c.l.b16 %v177
    %v822 = vunpack.c.h.b16 %v177
    %v823 = vunpack.c.l.b16 %v178
    %v824 = vunpack.c.h.b16 %v178
    %v825 = vunpack.c.l.b16 %v179
    %v826 = vunpack.c.h.b16 %v179
    %v827 = vunpack.c.l.b16 %v180
    %v828 = vunpack.c.h.b16 %v180
    %v829 = vunpack.c.l.b16 %v181
    %v830 = vunpack.c.h.b16 %v181
    %v831 = vunpack.c.l.b16 %v182
    %v832 = vunpack.c.h.b16 %v182
    %v833 = vunpack.c.l.b16 %v183
    %v834 = vunpack.c.h.b16 %v183
    %v835 = vunpack.c.l.b16 %v184
    %v836 = vunpack.c.h.b16 %v184
    %v837 = vunpack.c.l.b16 %v185
    %v838 = vunpack.c.h.b16 %v185
    %v839 = vunpack.c.l.b16 %v186
    %v840 = vunpack.c.h.b16 %v186
    %v841 = vunpack.c.l.b16 %v187
    %v842 = vunpack.c.h.b16 %v187
    %v843 = vunpack.c.l.b16 %v188
    %v844 = vunpack.c.h.b16 %v188
    %v845 = vunpack.c.l.b16 %v189
    %v846 = vunpack.c.h.b16 %v189
    %v847 = vunpack.c.l.b16 %v190
    %v848 = vunpack.c.h.b16 %v190
    %v849 = vunpack.c.l.b16 %v191
    %v850 = vunpack.c.h.b16 %v191
    %v851 = vunpack.c.l.b16 %v192
    %v852 = vunpack.c.h.b16 %v192
    %v853 = vunpack.c.l.b16 %v193
    %v854 = vunpack.c.h.b16 %v193
    %v855 = vunpack.c.l.b16 %v194
    %v856 = vunpack.c.h.b16 %v194
    %v857 = vunpack.c.l.b16 %v195
    %v858 = vunpack.c.h.b16 %v195
    %v859 = vunpack.c.l.b16 %v196
    %v860 = vunpack.c.h.b16 %v196
    %v861 = vunpack.c.l.b16 %v197
    %v862 = vunpack.c.h.b16 %v197
    %v863 = vunpack.c.l.b16 %v198
    %v864 = vunpack.c.h.b16 %v198
    %v865 = vunpack.c.l.b16 %v199
    %v866 = vunpack.c.h.b16 %v199
    %v867 = vunpack.c.l.b16 %v200
    %v868 = vunpack.c.h.b16 %v200
    %v869 = vunpack.c.l.b16 %v201
    %v870 = vunpack.c.h.b16 %v201
    %v871 = vunpack.c.l.b16 %v202
    %v872 = vunpack.c.h.b16 %v202
    %v873 = vunpack.c.l.b16 %v203
    %v874 = vunpack.c.h.b16 %v203
    %v875 = vunpack.c.l.b16 %v204
    %v876 = vunpack.c.h.b16 %v204
    %v877 = vunpack.c.l.b16 %v205
    %v878 = vunpack.c.h.b16 %v205
    %v879 = vunpack.c.l.b16 %v206
    %v880 = vunpack.c.h.b16 %v206
    %v881 = vunpack.c.l.b16 %v207
    %v882 = vunpack.c.h.b16 %v207
    %v883 = vunpack.c.l.b16 %v208
    %v884 = vunpack.c.h.b16 %v208
    %v885 = vunpack.c.l.b16 %v209
    %v886 = vunpack.c.h.b16 %v209
    %v887 = vunpack.c.l.b16 %v210
    %v888 = vunpack.c.h.b16 %v210
    %v889 = vunpack.c.l.b16 %v211
    %v890 = vunpack.c.h.b16 %v211
    %v891 = vunpack.c.l.b16 %v212
    %v892 = vunpack.c.h.b16 %v212
    %v893 = vunpack.c.l.b16 %v213
    %v894 = vunpack.c.h.b16 %v213
    %v895 = vunpack.c.l.b16 %v214
    %v896 = vunpack.c.h.b16 %v214
    %v897 = vunpack.c.l.b16 %v215
    %v898 = vunpack.c.h.b16 %v215
    %v899 = vunpack.c.l.b16 %v216
    %v900 = vunpack.c.h.b16 %v216
    %v901 = vunpack.c.l.b16 %v217
    %v902 = vunpack.c.h.b16 %v217
    %v903 = vunpack.c.l.b16 %v218
    %v904 = vunpack.c.h.b16 %v218
    %v905 = vunpack.c.l.b16 %v219
    %v906 = vunpack.c.h.b16 %v219
    %v907 = vunpack.c.l.b16 %v220
    %v908 = vunpack.c.h.b16 %v220
    %v909 = vunpack.c.l.b16 %v221
    %v910 = vunpack.c.h.b16 %v221
    %v911 = vunpack.c.l.b16 %v222
    %v912 = vunpack.c.h.b16 %v222
    %v913 = vunpack.c.l.b16 %v223
    %v914 = vunpack.c.h.b16 %v223
    %v915 = vunpack.c.l.b16 %v224
    %v916 = vunpack.c.h.b16 %v224
    %v917 = vunpack.c.l.b16 %v225
    %v918 = vunpack.c.h.b16 %v225
    %v919 = vunpack.c.l.b16 %v226
    %v920 = vunpack.c.h.b16 %v226
    %v921 = vunpack.c.l.b16 %v227
    %v922 = vunpack.c.h.b16 %v227
    %v923 = vunpack.c.l.b16 %v228
    %v924 = vunpack.c.h.b16 %v228
    %v925 = vunpack.c.l.b16 %v229
    %v926 = vunpack.c.h.b16 %v229
    %v927 = vunpack.c.l.b16 %v230
    %v928 = vunpack.c.h.b16 %v230
    %v929 = vunpack.c.l.b16 %v231
    %v930 = vunpack.c.h.b16 %v231
    %v931 = vunpack.c.l.b16 %v232
    %v932 = vunpack.c.h.b16 %v232
    %v933 = vunpack.c.l.b16 %v233
    %v934 = vunpack.c.h.b16 %v233
    %v935 = vunpack.c.l.b16 %v234
    %v936 = vunpack.c.h.b16 %v234
    %v937 = vunpack.c.l.b16 %v235
    %v938 = vunpack.c.h.b16 %v235
    %v939 = vunpack.c.l.b16 %v236
    %v940 = vunpack.c.h.b16 %v236
    %v941 = vunpack.c.l.b16 %v237
    %v942 = vunpack.c.h.b16 %v237
    %v943 = vunpack.c.l.b16 %v238
    %v944 = vunpack.c.h.b16 %v238
    %v945 = vunpack.c.l.b16 %v239
    %v946 = vunpack.c.h.b16 %v239
    %v947 = vunpack.c.l.b16 %v240
    %v948 = vunpack.c.h.b16 %v240
    %v949 = vunpack.c.l.b16 %v241
    %v950 = vunpack.c.h.b16 %v241
    %v951 = vunpack.c.l.b16 %v242
    %v952 = vunpack.c.h.b16 %v242
    %v953 = vunpack.c.l.b16 %v243
    %v954 = vunpack.c.h.b16 %v243
    %v955 = vunpack.c.l.b16 %v244
    %v956 = vunpack.c.h.b16 %v244
    %v957 = vunpack.c.l.b16 %v245
    %v958 = vunpack.c.h.b16 %v245
    %v959 = vunpack.c.l.b16 %v246
    %v960 = vunpack.c.h.b16 %v246
    %v961 = vunpack.c.l.b16 %v247
    %v962 = vunpack.c.h.b16 %v247
    %v963 = vunpack.c.l.b16 %v248
    %v964 = vunpack.c.h.b16 %v248
    %v965 = vunpack.c.l.b16 %v249
    %v966 = vunpack.c.h.b16 %v249
    %v967 = vunpack.c.l.b16 %v250
    %v968 = vunpack.c.h.b16 %v250
    %v969 = vunpack.c.l.b16 %v251
    %v970 = vunpack.c.h.b16 %v251
    %v971 = vunpack.c.l.b16 %v252
    %v972 = vunpack.c.h.b16 %v252
    %v973 = vunpack.c.l.b16 %v253
    %v974 = vunpack.c.h.b16 %v253
    %v975 = vunpack.c.l.b16 %v254
    %v976 = vunpack.c.h.b16 %v254
    %v977 = vunpack.c.l.b16 %v255
    %v978 = vunpack.c.h.b16 %v255
    %v979 = vunpack.c.l.b16 %v256
    %v980 = vunpack.c.h.b16 %v256
    %v981 = vunpack.c.l.b16 %v257
    %v982 = vunpack.c.h.b16 %v257
    %v983 = vunpack.c.l.b16 %v258
    %v984 = vunpack.c.h.b16 %v258
    %v985 = vunpack.c.l.b16 %v259
    %v986 = vunpack.c.h.b16 %v259
    %v987 = vunpack.c.l.b16 %v260
    %v988 = vunpack.c.h.b16 %v260
    %v989 = vunpack.c.l.b16 %v261
    %v990 = vunpack.c.h.b16 %v261
    %v991 = vunpack.c.l.b16 %v262
    %v992 = vunpack.c.h.b16 %v262
    %v993 = vunpack.c.l.b16 %v263
    %v994 = vunpack.c.h.b16 %v263
    %v995 = vunpack.c.l.b16 %v264
    %v996 = vunpack.c.h.b16 %v264
    %v997 = vunpack.c.l.b16 %v265
    %v998 = vunpack.c.h.b16 %v265
    %v999 = vunpack.c.l.b16 %v266
    %v1000 = vunpack.c.h.b16 %v266
    %v1001 = vunpack.c.l.b16 %v267
    %v1002 = vunpack.c.h.b16 %v267
    %v1003 = vunpack.c.l.b16 %v268
    %v1004 = vunpack.c.h.b16 %v268
    %v1005 = vunpack.c.l.b16 %v269
    %v1006 = vunpack.c.h.b16 %v269
    %v1007 = vunpack.c.l.b16 %v270
    %v1008 = vunpack.c.h.b16 %v270
    %v1009 = vunpack.c.l.b16 %v271
    %v1010 = vunpack.c.h.b16 %v271
    %v1011 = vunpack.c.l.b16 %v272
    %v1012 = vunpack.c.h.b16 %v272
    %v1013 = vunpack.c.l.b16 %v273
    %v1014 = vunpack.c.h.b16 %v273
    %v1015 = vunpack.c.l.b16 %v274
    %v1016 = vunpack.c.h.b16 %v274
    %v1017 = vunpack.c.l.b16 %v275
    %v1018 = vunpack.c.h.b16 %v275
    %v1019 = vunpack.c.l.b16 %v276
    %v1020 = vunpack.c.h.b16 %v276
    %v1021 = vunpack.c.l.b16 %v277
    %v1022 = vunpack.c.h.b16 %v277
    %v1023 = vunpack.c.l.b16 %v278
    %v1024 = vunpack.c.h.b16 %v278
    %v1025 = vunpack.c.l.b16 %v279
    %v1026 = vunpack.c.h.b16 %v279
    %v1027 = vunpack.c.l.b16 %v280
    %v1028 = vunpack.c.h.b16 %v280
    %v1029 = vunpack.c.l.b16 %v281
    %v1030 = vunpack.c.h.b16 %v281
    %v1031 = vunpack.c.l.b16 %v282
    %v1032 = vunpack.c.h.b16 %v282
    %v1033 = vunpack.c.l.b16 %v283
    %v1034 = vunpack.c.h.b16 %v283
    %v1035 = vunpack.c.l.b16 %v284
    %v1036 = vunpack.c.h.b16 %v284
    %v1037 = vunpack.c.l.b16 %v285
    %v1038 = vunpack.c.h.b16 %v285
    %v1039 = vunpack.c.l.b16 %v286
    %v1040 = vunpack.c.h.b16 %v286
    %v1041 = vunpack.c.l.b16 %v287
    %v1042 = vunpack.c.h.b16 %v287
    %v1043 = vunpack.c.l.b16 %v288
    %v1044 = vunpack.c.h.b16 %v288
    %v1045 = vunpack.c.l.b16 %v289
    %v1046 = vunpack.c.h.b16 %v289
    %v1047 = vunpack.c.l.b16 %v290
    %v1048 = vunpack.c.h.b16 %v290
    %v1049 = vunpack.c.l.b16 %v291
    %v1050 = vunpack.c.h.b16 %v291
    %v1051 = vunpack.c.l.b16 %v292
    %v1052 = vunpack.c.h.b16 %v292
    %v1053 = vunpack.c.l.b16 %v293
    %v1054 = vunpack.c.h.b16 %v293
    %v1055 = vunpack.c.l.b16 %v294
    %v1056 = vunpack.c.h.b16 %v294
    %v1057 = vunpack.c.l.b16 %v295
    %v1058 = vunpack.c.h.b16 %v295
    %v1059 = vunpack.c.l.b16 %v296
    %v1060 = vunpack.c.h.b16 %v296
    %v1061 = vunpack.c.l.b16 %v297
    %v1062 = vunpack.c.h.b16 %v297
    %v1063 = vunpack.c.l.b16 %v298
    %v1064 = vunpack.c.h.b16 %v298
    %v1065 = vunpack.c.l.b16 %v299
    %v1066 = vunpack.c.h.b16 %v299
    %v1067 = vunpack.c.l.b16 %v300
    %v1068 = vunpack.c.h.b16 %v300
    %v1069 = vunpack.c.l.b16 %v301
    %v1070 = vunpack.c.h.b16 %v301
    %v1071 = vunpack.c.l.b16 %v302
    %v1072 = vunpack.c.h.b16 %v302
    %v1073 = vunpack.c.l.b16 %v303
    %v1074 = vunpack.c.h.b16 %v303
    %v1075 = vunpack.c.l.b16 %v304
    %v1076 = vunpack.c.h.b16 %v304
    %v1077 = vunpack.c.l.b16 %v305
    %v1078 = vunpack.c.h.b16 %v305
    %v1079 = vunpack.c.l.b16 %v306
    %v1080 = vunpack.c.h.b16 %v306
    %v1081 = vunpack.c.l.b16 %v307
    %v1082 = vunpack.c.h.b16 %v307
    %v1083 = vunpack.c.l.b16 %v308
    %v1084 = vunpack.c.h.b16 %v308
    %v1085 = vunpack.c.l.b16 %v309
    %v1086 = vunpack.c.h.b16 %v309
    %v1087 = vunpack.c.l.b16 %v310
    %v1088 = vunpack.c.h.b16 %v310
    %v1089 = vunpack.c.l.b16 %v311
    %v1090 = vunpack.c.h.b16 %v311
    %v1091 = vunpack.c.l.b16 %v312
    %v1092 = vunpack.c.h.b16 %v312
    %v1093 = vunpack.c.l.b16 %v313
    %v1094 = vunpack.c.h.b16 %v313
    %v1095 = vunpack.c.l.b16 %v314
    %v1096 = vunpack.c.h.b16 %v314
    %v1097 = vunpack.c.l.b16 %v315
    %v1098 = vunpack.c.h.b16 %v315
    %v1099 = vunpack.c.l.b16 %v316
    %v1100 = vunpack.c.h.b16 %v316
    %v1101 = vunpack.c.l.b16 %v317
    %v1102 = vunpack.c.h.b16 %v317
    %v1103 = vunpack.c.l.b16 %v318
    %v1104 = vunpack.c.h.b16 %v318
    %v1105 = vunpack.c.l.b16 %v319
    %v1106 = vunpack.c.h.b16 %v319
    %v1107 = vunpack.c.l.b16 %v320
    %v1108 = vunpack.c.h.b16 %v320
    %v1109 = vunpack.c.l.b16 %v321
    %v1110 = vunpack.c.h.b16 %v321
    %v1111 = vunpack.c.l.b16 %v322
    %v1112 = vunpack.c.h.b16 %v322
    %v1113 = vunpack.c.l.b16 %v323
    %v1114 = vunpack.c.h.b16 %v323
    %v1115 = vunpack.c.l.b16 %v324
    %v1116 = vunpack.c.h.b16 %v324
    %v1117 = vunpack.c.l.b16 %v325
    %v1118 = vunpack.c.h.b16 %v325
    %v1119 = vunpack.c.l.b16 %v326
    %v1120 = vunpack.c.h.b16 %v326
    %v1121 = vunpack.c.l.b16 %v327
    %v1122 = vunpack.c.h.b16 %v327
    %v1123 = vunpack.c.l.b16 %v328
    %v1124 = vunpack.c.h.b16 %v328
    %v1125 = vunpack.c.l.b16 %v329
    %v1126 = vunpack.c.h.b16 %v329
    %v1127 = vunpack.c.l.b16 %v330
    %v1128 = vunpack.c.h.b16 %v330
    %v1129 = vunpack.c.l.b16 %v331
    %v1130 = vunpack.c.h.b16 %v331
    %v1131 = vunpack.c.l.b16 %v332
    %v1132 = vunpack.c.h.b16 %v332
    %v1133 = vunpack.c.l.b16 %v333
    %v1134 = vunpack.c.h.b16 %v333
    %v1135 = vunpack.c.l.b16 %v334
    %v1136 = vunpack.c.h.b16 %v334
    %v1137 = vunpack.c.l.b16 %v335
    %v1138 = vunpack.c.h.b16 %v335
    %v1139 = vunpack.c.l.b16 %v336
    %v1140 = vunpack.c.h.b16 %v336
    %v1141 = vunpack.c.l.b16 %v337
    %v1142 = vunpack.c.h.b16 %v337
    %v1143 = vunpack.c.l.b16 %v338
    %v1144 = vunpack.c.h.b16 %v338
    %v1145 = vunpack.c.l.b16 %v339
    %v1146 = vunpack.c.h.b16 %v339
    %v1147 = vunpack.c.l.b16 %v340
    %v1148 = vunpack.c.h.b16 %v340
    %v1149 = vunpack.c.l.b16 %v341
    %v1150 = vunpack.c.h.b16 %v341
    %v1151 = vunpack.c.l.b16 %v342
    %v1152 = vunpack.c.h.b16 %v342
    %v1153 = vunpack.c.l.b16 %v343
    %v1154 = vunpack.c.h.b16 %v343
    %v1155 = vunpack.c.l.b16 %v344
    %v1156 = vunpack.c.h.b16 %v344
    %v1157 = vunpack.c.l.b16 %v345
    %v1158 = vunpack.c.h.b16 %v345
    %v1159 = vunpack.c.l.b16 %v346
    %v1160 = vunpack.c.h.b16 %v346
    %v1161 = vunpack.c.l.b16 %v347
    %v1162 = vunpack.c.h.b16 %v347
    %v1163 = vunpack.c.l.b16 %v348
    %v1164 = vunpack.c.h.b16 %v348
    %v1165 = vunpack.c.l.b16 %v349
    %v1166 = vunpack.c.h.b16 %v349
    %v1167 = vunpack.c.l.b16 %v350
    %v1168 = vunpack.c.h.b16 %v350
    %v1169 = vpack.c.b16 %v661, %v657
    %v1170 = vpack.c.b16 %v662, %v658
    %v1171 = vpack.c.b16 %v663, %v659
    %v1172 = vpack.c.b16 %v664, %v660
    %v1173 = vpack.c.b16 %v669, %v665
    %v1174 = vpack.c.b16 %v670, %v666
    %v1175 = vpack.c.b16 %v671, %v667
    %v1176 = vpack.c.b16 %v672, %v668
    %v1177 = vpack.c.b16 %v677, %v673
    %v1178 = vpack.c.b16 %v678, %v674
    %v1179 = vpack.c.b16 %v679, %v675
    %v1180 = vpack.c.b16 %v680, %v676
    %v1181 = vpack.c.b16 %v685, %v681
    %v1182 = vpack.c.b16 %v686, %v682
    %v1183 = vpack.c.b16 %v687, %v683
    %v1184 = vpack.c.b16 %v688, %v684
    %v1185 = vpack.c.b16 %v693, %v689
    %v1186 = vpack.c.b16 %v694, %v690
    %v1187 = vpack.c.b16 %v695, %v691
    %v1188 = vpack.c.b16 %v696, %v692
    %v1189 = vpack.c.b16 %v701, %v697
    %v1190 = vpack.c.b16 %v702, %v698
    %v1191 = vpack.c.b16 %v703, %v699
    %v1192 = vpack.c.b16 %v704, %v700
    %v1193 = vpack.c.b16 %v709, %v705
    %v1194 = vpack.c.b16 %v710, %v706
    %v1195 = vpack.c.b16 %v711, %v707
    %v1196 = vpack.c.b16 %v712, %v708
    %v1197 = vpack.c.b16 %v717, %v713
    %v1198 = vpack.c.b16 %v718, %v714
    %v1199 = vpack.c.b16 %v719, %v715
    %v1200 = vpack.c.b16 %v720, %v716
    %v1201 = vpack.c.b16 %v725, %v721
    %v1202 = vpack.c.b16 %v726, %v722
    %v1203 = vpack.c.b16 %v727, %v723
    %v1204 = vpack.c.b16 %v728, %v724
    %v1205 = vpack.c.b16 %v733, %v729
    %v1206 = vpack.c.b16 %v734, %v730
    %v1207 = vpack.c.b16 %v735, %v731
    %v1208 = vpack.c.b16 %v736, %v732
    %v1209 = vpack.c.b16 %v741, %v737
    %v1210 = vpack.c.b16 %v742, %v738
    %v1211 = vpack.c.b16 %v743, %v739
    %v1212 = vpack.c.b16 %v744, %v740
    %v1213 = vpack.c.b16 %v749, %v745
    %v1214 = vpack.c.b16 %v750, %v746
    %v1215 = vpack.c.b16 %v751, %v747
    %v1216 = vpack.c.b16 %v752, %v748
    %v1217 = vpack.c.b16 %v757, %v753
    %v1218 = vpack.c.b16 %v758, %v754
    %v1219 = vpack.c.b16 %v759, %v755
    %v1220 = vpack.c.b16 %v760, %v756
    %v1221 = vpack.c.b16 %v765, %v761
    %v1222 = vpack.c.b16 %v766, %v762
    %v1223 = vpack.c.b16 %v767, %v763
    %v1224 = vpack.c.b16 %v768, %v764
    %v1225 = vpack.c.b16 %v773, %v769
    %v1226 = vpack.c.b16 %v774, %v770
    %v1227 = vpack.c.b16 %v775, %v771
    %v1228 = vpack.c.b16 %v776, %v772
    %v1229 = vpack.c.b16 %v781, %v777
    %v1230 = vpack.c.b16 %v782, %v778
    %v1231 = vpack.c.b16 %v783, %v779
    %v1232 = vpack.c.b16 %v784, %v780
    %v1233 = vpack.c.b16 %v789, %v785
    %v1234 = vpack.c.b16 %v790, %v786
    %v1235 = vpack.c.b16 %v791, %v787
    %v1236 = vpack.c.b16 %v792, %v788
    %v1237 = vpack.c.b16 %v797, %v793
    %v1238 = vpack.c.b16 %v798, %v794
    %v1239 = vpack.c.b16 %v799, %v795
    %v1240 = vpack.c.b16 %v800, %v796
    %v1241 = vpack.c.b16 %v805, %v801
    %v1242 = vpack.c.b16 %v806, %v802
    %v1243 = vpack.c.b16 %v807, %v803
    %v1244 = vpack.c.b16 %v808, %v804
    %v1245 = vpack.c.b16 %v813, %v809
    %v1246 = vpack.c.b16 %v814, %v810
    %v1247 = vpack.c.b16 %v815, %v811
    %v1248 = vpack.c.b16 %v816, %v812
    %v1249 = vpack.c.b16 %v821, %v817
    %v1250 = vpack.c.b16 %v822, %v818
    %v1251 = vpack.c.b16 %v823, %v819
    %v1252 = vpack.c.b16 %v824, %v820
    %v1253 = vpack.c.b16 %v829, %v825
    %v1254 = vpack.c.b16 %v830, %v826
    %v1255 = vpack.c.b16 %v831, %v827
    %v1256 = vpack.c.b16 %v832, %v828
    %v1257 = vpack.c.b16 %v837, %v833
    %v1258 = vpack.c.b16 %v838, %v834
    %v1259 = vpack.c.b16 %v839, %v835
    %v1260 = vpack.c.b16 %v840, %v836
    %v1261 = vpack.c.b16 %v845, %v841
    %v1262 = vpack.c.b16 %v846, %v842
    %v1263 = vpack.c.b16 %v847, %v843
    %v1264 = vpack.c.b16 %v848, %v844
    %v1265 = vpack.c.b16 %v853, %v849
    %v1266 = vpack.c.b16 %v854, %v850
    %v1267 = vpack.c.b16 %v855, %v851
    %v1268 = vpack.c.b16 %v856, %v852
    %v1269 = vpack.c.b16 %v861, %v857
    %v1270 = vpack.c.b16 %v862, %v858
    %v1271 = vpack.c.b16 %v863, %v859
    %v1272 = vpack.c.b16 %v864, %v860
    %v1273 = vpack.c.b16 %v869, %v865
    %v1274 = vpack.c.b16 %v870, %v866
    %v1275 = vpack.c.b16 %v871, %v867
    %v1276 = vpack.c.b16 %v872, %v868
    %v1277 = vpack.c.b16 %v877, %v873
    %v1278 = vpack.c.b16 %v878, %v874
    %v1279 = vpack.c.b16 %v879, %v875
    %v1280 = vpack.c.b16 %v880, %v876
    %v1281 = vpack.c.b16 %v885, %v881
    %v1282 = vpack.c.b16 %v886, %v882
    %v1283 = vpack.c.b16 %v887, %v883
    %v1284 = vpack.c.b16 %v888, %v884
    %v1285 = vpack.c.b16 %v893, %v889
    %v1286 = vpack.c.b16 %v894, %v890
    %v1287 = vpack.c.b16 %v895, %v891
    %v1288 = vpack.c.b16 %v896, %v892
    %v1289 = vpack.c.b16 %v901, %v897
    %v1290 = vpack.c.b16 %v902, %v898
    %v1291 = vpack.c.b16 %v903, %v899
    %v1292 = vpack.c.b16 %v904, %v900
    %v1293 = vpack.c.b16 %v909, %v905
    %v1294 = vpack.c.b16 %v910, %v906
    %v1295 = vpack.c.b16 %v911, %v907
    %v1296 = vpack.c.b16 %v912, %v908
    %v1297 = vpack.c.b16 %v917, %v913
    %v1298 = vpack.c.b16 %v918, %v914
    %v1299 = vpack.c.b16 %v919, %v915
    %v1300 = vpack.c.b16 %v920, %v916
    %v1301 = vpack.c.b16 %v925, %v921
    %v1302 = vpack.c.b16 %v926, %v922
    %v1303 = vpack.c.b16 %v927, %v923
    %v1304 = vpack.c.b16 %v928, %v924
    %v1305 = vpack.c.b16 %v933, %v929
    %v1306 = vpack.c.b16 %v934, %v930
    %v1307 = vpack.c.b16 %v935, %v931
    %v1308 = vpack.c.b16 %v936, %v932
    %v1309 = vpack.c.b16 %v941, %v937
    %v1310 = vpack.c.b16 %v942, %v938
    %v1311 = vpack.c.b16 %v943, %v939
    %v1312 = vpack.c.b16 %v944, %v940
    %v1313 = vpack.c.b16 %v949, %v945
    %v1314 = vpack.c.b16 %v950, %v946
    %v1315 = vpack.c.b16 %v951, %v947
    %v1316 = vpack.c.b16 %v952, %v948
    %v1317 = vpack.c.b16 %v957, %v953
    %v1318 = vpack.c.b16 %v958, %v954
    %v1319 = vpack.c.b16 %v959, %v955
    %v1320 = vpack.c.b16 %v960, %v956
    %v1321 = vpack.c.b16 %v965, %v961
    %v1322 = vpack.c.b16 %v966, %v962
    %v1323 = vpack.c.b16 %v967, %v963
    %v1324 = vpack.c.b16 %v968, %v964
    %v1325 = vpack.c.b16 %v973, %v969
    %v1326 = vpack.c.b16 %v974, %v970
    %v1327 = vpack.c.b16 %v975, %v971
    %v1328 = vpack.c.b16 %v976, %v972
    %v1329 = vpack.c.b16 %v981, %v977
    %v1330 = vpack.c.b16 %v982, %v978
    %v1331 = vpack.c.b16 %v983, %v979
    %v1332 = vpack.c.b16 %v984, %v980
    %v1333 = vpack.c.b16 %v989, %v985
    %v1334 = vpack.c.b16 %v990, %v986
    %v1335 = vpack.c.b16 %v991, %v987
    %v1336 = vpack.c.b16 %v992, %v988
    %v1337 = vpack.c.b16 %v997, %v993
    %v1338 = vpack.c.b16 %v998, %v994
    %v1339 = vpack.c.b16 %v999, %v995
    %v1340 = vpack.c.b16 %v1000, %v996
    %v1341 = vpack.c.b16 %v1005, %v1001
    %v1342 = vpack.c.b16 %v1006, %v1002
    %v1343 = vpack.c.b16 %v1007, %v1003
    %v1344 = vpack.c.b16 %v1008, %v1004
    %v1345 = vpack.c.b16 %v1013, %v1009
    %v1346 = vpack.c.b16 %v1014, %v1010
    %v1347 = vpack.c.b16 %v1015, %v1011
    %v1348 = vpack.c.b16 %v1016, %v1012
    %v1349 = vpack.c.b16 %v1021, %v1017
    %v1350 = vpack.c.b16 %v1022, %v1018
    %v1351 = vpack.c.b16 %v1023, %v1019
    %v1352 = vpack.c.b16 %v1024, %v1020
    %v1353 = vpack.c.b16 %v1029, %v1025
    %v1354 = vpack.c.b16 %v1030, %v1026
    %v1355 = vpack.c.b16 %v1031, %v1027
    %v1356 = vpack.c.b16 %v1032, %v1028
    %v1357 = vpack.c.b16 %v1037, %v1033
    %v1358 = vpack.c.b16 %v1038, %v1034
    %v1359 = vpack.c.b16 %v1039, %v1035
    %v1360 = vpack.c.b16 %v1040, %v1036
    %v1361 = vpack.c.b16 %v1045, %v1041
    %v1362 = vpack.c.b16 %v1046, %v1042
    %v1363 = vpack.c.b16 %v1047, %v1043
    %v1364 = vpack.c.b16 %v1048, %v1044
    %v1365 = vpack.c.b16 %v1053, %v1049
    %v1366 = vpack.c.b16 %v1054, %v1050
    %v1367 = vpack.c.b16 %v1055, %v1051
    %v1368 = vpack.c.b16 %v1056, %v1052
    %v1369 = vpack.c.b16 %v1061, %v1057
    %v1370 = vpack.c.b16 %v1062, %v1058
    %v1371 = vpack.c.b16 %v1063, %v1059
    %v1372 = vpack.c.b16 %v1064, %v1060
    %v1373 = vpack.c.b16 %v1069, %v1065
    %v1374 = vpack.c.b16 %v1070, %v1066
    %v1375 = vpack.c.b16 %v1071, %v1067
    %v1376 = vpack.c.b16 %v1072, %v1068
    %v1377 = vpack.c.b16 %v1077, %v1073
    %v1378 = vpack.c.b16 %v1078, %v1074
    %v1379 = vpack.c.b16 %v1079, %v1075
    %v1380 = vpack.c.b16 %v1080, %v1076
    %v1381 = vpack.c.b16 %v1085, %v1081
    %v1382 = vpack.c.b16 %v1086, %v1082
    %v1383 = vpack.c.b16 %v1087, %v1083
    %v1384 = vpack.c.b16 %v1088, %v1084
    %v1385 = vpack.c.b16 %v1093, %v1089
    %v1386 = vpack.c.b16 %v1094, %v1090
    %v1387 = vpack.c.b16 %v1095, %v1091
    %v1388 = vpack.c.b16 %v1096, %v1092
    %v1389 = vpack.c.b16 %v1101, %v1097
    %v1390 = vpack.c.b16 %v1102, %v1098
    %v1391 = vpack.c.b16 %v1103, %v1099
    %v1392 = vpack.c.b16 %v1104, %v1100
    %v1393 = vpack.c.b16 %v1109, %v1105
    %v1394 = vpack.c.b16 %v1110, %v1106
    %v1395 = vpack.c.b16 %v1111, %v1107
    %v1396 = vpack.c.b16 %v1112, %v1108
    %v1397 = vpack.c.b16 %v1117, %v1113
    %v1398 = vpack.c.b16 %v1118, %v1114
    %v1399 = vpack.c.b16 %v1119, %v1115
    %v1400 = vpack.c.b16 %v1120, %v1116
    %v1401 = vpack.c.b16 %v1125, %v1121
    %v1402 = vpack.c.b16 %v1126, %v1122
    %v1403 = vpack.c.b16 %v1127, %v1123
    %v1404 = vpack.c.b16 %v1128, %v1124
    %v1405 = vpack.c.b16 %v1133, %v1129
    %v1406 = vpack.c.b16 %v1134, %v1130
    %v1407 = vpack.c.b16 %v1135, %v1131
    %v1408 = vpack.c.b16 %v1136, %v1132
    %v1409 = vpack.c.b16 %v1141, %v1137
    %v1410 = vpack.c.b16 %v1142, %v1138
    %v1411 = vpack.c.b16 %v1143, %v1139
    %v1412 = vpack.c.b16 %v1144, %v1140
    %v1413 = vpack.c.b16 %v1149, %v1145
    %v1414 = vpack.c.b16 %v1150, %v1146
    %v1415 = vpack.c.b16 %v1151, %v1147
    %v1416 = vpack.c.b16 %v1152, %v1148
    %v1417 = vpack.c.b16 %v1157, %v1153
    %v1418 = vpack.c.b16 %v1158, %v1154
    %v1419 = vpack.c.b16 %v1159, %v1155
    %v1420 = vpack.c.b16 %v1160, %v1156
    %v1421 = vpack.c.b16 %v1165, %v1161
    %v1422 = vpack.c.b16 %v1166, %v1162
    %v1423 = vpack.c.b16 %v1167, %v1163
    %v1424 = vpack.c.b16 %v1168, %v1164
    %1681 = vmatprep.subr.bf16.mxu0 %v1198
    %1682 = vmatpush1.bf16.msra.mxu0 %v1197
    %1683 = vmatprep.subr.bf16.mxu0 %v1194
    %1684 = vmatpush1.bf16.msra.mxu0 %v1193
    %1685 = vmatprep.subr.bf16.mxu0 %v1190
    %1686 = vmatpush1.bf16.msra.mxu0 %v1189
    %1687 = vmatprep.subr.bf16.mxu0 %v1186
    %1688 = vmatpush1.bf16.msra.mxu0 %v1185
    %1689 = vmatprep.subr.bf16.mxu0 %v1182
    %1690 = vmatpush1.bf16.msra.mxu0 %v1181
    %1691 = vmatprep.subr.bf16.mxu0 %v1178
    %1692 = vmatpush1.bf16.msra.mxu0 %v1177
    %1693 = vmatprep.subr.bf16.mxu0 %v1174
    %1694 = vmatpush1.bf16.msra.mxu0 %v1173
    %1695 = vmatprep.subr.bf16.mxu0 %v1170
    %1696 = vmatpush1.bf16.msra.mxu0 %v1169
    %1697 = vmatprep.subr.bf16.mxu0 %v1230
    %1698 = vmatpush2.bf16.msra.mxu0 %v1229
    %1699 = vmatprep.subr.bf16.mxu0 %v1226
    %1700 = vmatpush2.bf16.msra.mxu0 %v1225
    %1701 = vmatprep.subr.bf16.mxu0 %v1222
    %1702 = vmatpush2.bf16.msra.mxu0 %v1221
    %1703 = vmatprep.subr.bf16.mxu0 %v1218
    %1704 = vmatpush2.bf16.msra.mxu0 %v1217
    %1705 = vmatprep.subr.bf16.mxu0 %v1214
    %1706 = vmatpush2.bf16.msra.mxu0 %v1213
    %1707 = vmatprep.subr.bf16.mxu0 %v1210
    %1708 = vmatpush2.bf16.msra.mxu0 %v1209
    %1709 = vmatprep.subr.bf16.mxu0 %v1206
    %1710 = vmatpush2.bf16.msra.mxu0 %v1205
    %1711 = vmatprep.subr.bf16.mxu0 %v1202
    %1712 = vmatpush2.bf16.msra.mxu0 %v1201
    %1713 = vmatprep.mubr.bf16.mxu0 %v386
    %1714 = vmatmul.mubr.bf16.gmra.mxu0 %v385
    %v1715 = vpop.f32.mrf.mxu0
    %v1716 = vadd.f32 %v356, %v1715
    %v1717 = vpop.f32.mrf.mxu0
    %v1718 = vadd.f32 %v360, %v1717
    %v1719 = vpop.f32.mrf.mxu0
    %v1720 = vpop.f32.mrf.mxu0
    %1721 = vdwg.mxu0
    %1722 = vmatprep.subr.bf16.mxu0 %v1262
    %1723 = vmatpush1.bf16.msra.mxu0 %v1261
    %1724 = vmatprep.subr.bf16.mxu0 %v1258
    %1725 = vmatpush1.bf16.msra.mxu0 %v1257
    %1726 = vmatprep.subr.bf16.mxu0 %v1254
    %1727 = vmatpush1.bf16.msra.mxu0 %v1253
    %1728 = vmatprep.subr.bf16.mxu0 %v1250
    %1729 = vmatpush1.bf16.msra.mxu0 %v1249
    %1730 = vmatprep.subr.bf16.mxu0 %v1246
    %1731 = vmatpush1.bf16.msra.mxu0 %v1245
    %1732 = vmatprep.subr.bf16.mxu0 %v1242
    %1733 = vmatpush1.bf16.msra.mxu0 %v1241
    %1734 = vmatprep.subr.bf16.mxu0 %v1238
    %1735 = vmatpush1.bf16.msra.mxu0 %v1237
    %1736 = vmatprep.subr.bf16.mxu0 %v1234
    %1737 = vmatpush1.bf16.msra.mxu0 %v1233
    %1738 = vmatprep.subr.bf16.mxu0 %v1294
    %1739 = vmatpush2.bf16.msra.mxu0 %v1293
    %1740 = vmatprep.subr.bf16.mxu0 %v1290
    %1741 = vmatpush2.bf16.msra.mxu0 %v1289
    %1742 = vmatprep.subr.bf16.mxu0 %v1286
    %1743 = vmatpush2.bf16.msra.mxu0 %v1285
    %1744 = vmatprep.subr.bf16.mxu0 %v1282
    %1745 = vmatpush2.bf16.msra.mxu0 %v1281
    %1746 = vmatprep.subr.bf16.mxu0 %v1278
    %1747 = vmatpush2.bf16.msra.mxu0 %v1277
    %1748 = vmatprep.subr.bf16.mxu0 %v1274
    %1749 = vmatpush2.bf16.msra.mxu0 %v1273
    %1750 = vmatprep.subr.bf16.mxu0 %v1270
    %1751 = vmatpush2.bf16.msra.mxu0 %v1269
    %1752 = vmatprep.subr.bf16.mxu0 %v1266
    %1753 = vmatpush2.bf16.msra.mxu0 %v1265
    %1754 = vmatprep.mubr.bf16.mxu0 %v388
    %1755 = vmatmul.mubr.bf16.gmra.mxu0 %v387
    %v1756 = vpop.f32.mrf.mxu0
    %v1757 = vadd.f32 %v1716, %v1756
    %v1758 = vpop.f32.mrf.mxu0
    %v1759 = vadd.f32 %v1718, %v1758
    %v1760 = vpop.f32.mrf.mxu0
    %v1761 = vpop.f32.mrf.mxu0
    %1762 = vdwg.mxu0
    %1763 = vmatprep.subr.bf16.mxu0 %v1326
    %1764 = vmatpush1.bf16.msra.mxu0 %v1325
    %1765 = vmatprep.subr.bf16.mxu0 %v1322
    %1766 = vmatpush1.bf16.msra.mxu0 %v1321
    %1767 = vmatprep.subr.bf16.mxu0 %v1318
    %1768 = vmatpush1.bf16.msra.mxu0 %v1317
    %1769 = vmatprep.subr.bf16.mxu0 %v1314
    %1770 = vmatpush1.bf16.msra.mxu0 %v1313
    %1771 = vmatprep.subr.bf16.mxu0 %v1310
    %1772 = vmatpush1.bf16.msra.mxu0 %v1309
    %1773 = vmatprep.subr.bf16.mxu0 %v1306
    %1774 = vmatpush1.bf16.msra.mxu0 %v1305
    %1775 = vmatprep.subr.bf16.mxu0 %v1302
    %1776 = vmatpush1.bf16.msra.mxu0 %v1301
    %1777 = vmatprep.subr.bf16.mxu0 %v1298
    %1778 = vmatpush1.bf16.msra.mxu0 %v1297
    %1779 = vmatprep.subr.bf16.mxu0 %v1358
    %1780 = vmatpush2.bf16.msra.mxu0 %v1357
    %1781 = vmatprep.subr.bf16.mxu0 %v1354
    %1782 = vmatpush2.bf16.msra.mxu0 %v1353
    %1783 = vmatprep.subr.bf16.mxu0 %v1350
    %1784 = vmatpush2.bf16.msra.mxu0 %v1349
    %1785 = vmatprep.subr.bf16.mxu0 %v1346
    %1786 = vmatpush2.bf16.msra.mxu0 %v1345
    %1787 = vmatprep.subr.bf16.mxu0 %v1342
    %1788 = vmatpush2.bf16.msra.mxu0 %v1341
    %1789 = vmatprep.subr.bf16.mxu0 %v1338
    %1790 = vmatpush2.bf16.msra.mxu0 %v1337
    %1791 = vmatprep.subr.bf16.mxu0 %v1334
    %1792 = vmatpush2.bf16.msra.mxu0 %v1333
    %1793 = vmatprep.subr.bf16.mxu0 %v1330
    %1794 = vmatpush2.bf16.msra.mxu0 %v1329
    %1795 = vmatprep.mubr.bf16.mxu0 %v390
    %1796 = vmatmul.mubr.bf16.gmra.mxu0 %v389
    %v1797 = vpop.f32.mrf.mxu0
    %v1798 = vadd.f32 %v1757, %v1797
    %v1799 = vpop.f32.mrf.mxu0
    %v1800 = vadd.f32 %v1759, %v1799
    %v1801 = vpop.f32.mrf.mxu0
    %v1802 = vpop.f32.mrf.mxu0
    %1803 = vdwg.mxu0
    %1804 = vmatprep.subr.bf16.mxu0 %v1390
    %1805 = vmatpush1.bf16.msra.mxu0 %v1389
    %1806 = vmatprep.subr.bf16.mxu0 %v1386
    %1807 = vmatpush1.bf16.msra.mxu0 %v1385
    %1808 = vmatprep.subr.bf16.mxu0 %v1382
    %1809 = vmatpush1.bf16.msra.mxu0 %v1381
    %1810 = vmatprep.subr.bf16.mxu0 %v1378
    %1811 = vmatpush1.bf16.msra.mxu0 %v1377
    %1812 = vmatprep.subr.bf16.mxu0 %v1374
    %1813 = vmatpush1.bf16.msra.mxu0 %v1373
    %1814 = vmatprep.subr.bf16.mxu0 %v1370
    %1815 = vmatpush1.bf16.msra.mxu0 %v1369
    %1816 = vmatprep.subr.bf16.mxu0 %v1366
    %1817 = vmatpush1.bf16.msra.mxu0 %v1365
    %1818 = vmatprep.subr.bf16.mxu0 %v1362
    %1819 = vmatpush1.bf16.msra.mxu0 %v1361
    %1820 = vmatprep.subr.bf16.mxu0 %v1422
    %1821 = vmatpush2.bf16.msra.mxu0 %v1421
    %1822 = vmatprep.subr.bf16.mxu0 %v1418
    %1823 = vmatpush2.bf16.msra.mxu0 %v1417
    %1824 = vmatprep.subr.bf16.mxu0 %v1414
    %1825 = vmatpush2.bf16.msra.mxu0 %v1413
    %1826 = vmatprep.subr.bf16.mxu0 %v1410
    %1827 = vmatpush2.bf16.msra.mxu0 %v1409
    %1828 = vmatprep.subr.bf16.mxu0 %v1406
    %1829 = vmatpush2.bf16.msra.mxu0 %v1405
    %1830 = vmatprep.subr.bf16.mxu0 %v1402
    %1831 = vmatpush2.bf16.msra.mxu0 %v1401
    %1832 = vmatprep.subr.bf16.mxu0 %v1398
    %1833 = vmatpush2.bf16.msra.mxu0 %v1397
    %1834 = vmatprep.subr.bf16.mxu0 %v1394
    %1835 = vmatpush2.bf16.msra.mxu0 %v1393
    %1836 = vmatprep.mubr.bf16.mxu0 %v392
    %1837 = vmatmul.mubr.bf16.gmra.mxu0 %v391
    %v1838 = vpop.f32.mrf.mxu0
    %v1839 = vadd.f32 %v1798, %v1838
    %v1840 = vpop.f32.mrf.mxu0
    %v1841 = vadd.f32 %v1800, %v1840
    %v1842 = vpop.f32.mrf.mxu0
    %v1843 = vpop.f32.mrf.mxu0
    %1844 = vdwg.mxu0
    %1845 = vmatprep.subr.bf16.mxu0 %v1200
    %1846 = vmatpush1.bf16.msra.mxu0 %v1199
    %1847 = vmatprep.subr.bf16.mxu0 %v1196
    %1848 = vmatpush1.bf16.msra.mxu0 %v1195
    %1849 = vmatprep.subr.bf16.mxu0 %v1192
    %1850 = vmatpush1.bf16.msra.mxu0 %v1191
    %1851 = vmatprep.subr.bf16.mxu0 %v1188
    %1852 = vmatpush1.bf16.msra.mxu0 %v1187
    %1853 = vmatprep.subr.bf16.mxu0 %v1184
    %1854 = vmatpush1.bf16.msra.mxu0 %v1183
    %1855 = vmatprep.subr.bf16.mxu0 %v1180
    %1856 = vmatpush1.bf16.msra.mxu0 %v1179
    %1857 = vmatprep.subr.bf16.mxu0 %v1176
    %1858 = vmatpush1.bf16.msra.mxu0 %v1175
    %1859 = vmatprep.subr.bf16.mxu0 %v1172
    %1860 = vmatpush1.bf16.msra.mxu0 %v1171
    %1861 = vmatprep.subr.bf16.mxu0 %v1232
    %1862 = vmatpush2.bf16.msra.mxu0 %v1231
    %1863 = vmatprep.subr.bf16.mxu0 %v1228
    %1864 = vmatpush2.bf16.msra.mxu0 %v1227
    %1865 = vmatprep.subr.bf16.mxu0 %v1224
    %1866 = vmatpush2.bf16.msra.mxu0 %v1223
    %1867 = vmatprep.subr.bf16.mxu0 %v1220
    %1868 = vmatpush2.bf16.msra.mxu0 %v1219
    %1869 = vmatprep.subr.bf16.mxu0 %v1216
    %1870 = vmatpush2.bf16.msra.mxu0 %v1215
    %1871 = vmatprep.subr.bf16.mxu0 %v1212
    %1872 = vmatpush2.bf16.msra.mxu0 %v1211
    %1873 = vmatprep.subr.bf16.mxu0 %v1208
    %1874 = vmatpush2.bf16.msra.mxu0 %v1207
    %1875 = vmatprep.subr.bf16.mxu0 %v1204
    %1876 = vmatpush2.bf16.msra.mxu0 %v1203
    %1877 = vmatprep.mubr.bf16.mxu0 %v386
    %1878 = vmatmul.mubr.bf16.gmra.mxu0 %v385
    %v1879 = vpop.f32.mrf.mxu0
    %v1880 = vadd.f32 %v364, %v1879
    %v1881 = vpop.f32.mrf.mxu0
    %v1882 = vadd.f32 %v368, %v1881
    %v1883 = vpop.f32.mrf.mxu0
    %v1884 = vpop.f32.mrf.mxu0
    %1885 = vdwg.mxu0
    %1886 = vmatprep.subr.bf16.mxu0 %v1264
    %1887 = vmatpush1.bf16.msra.mxu0 %v1263
    %1888 = vmatprep.subr.bf16.mxu0 %v1260
    %1889 = vmatpush1.bf16.msra.mxu0 %v1259
    %1890 = vmatprep.subr.bf16.mxu0 %v1256
    %1891 = vmatpush1.bf16.msra.mxu0 %v1255
    %1892 = vmatprep.subr.bf16.mxu0 %v1252
    %1893 = vmatpush1.bf16.msra.mxu0 %v1251
    %1894 = vmatprep.subr.bf16.mxu0 %v1248
    %1895 = vmatpush1.bf16.msra.mxu0 %v1247
    %1896 = vmatprep.subr.bf16.mxu0 %v1244
    %1897 = vmatpush1.bf16.msra.mxu0 %v1243
    %1898 = vmatprep.subr.bf16.mxu0 %v1240
    %1899 = vmatpush1.bf16.msra.mxu0 %v1239
    %1900 = vmatprep.subr.bf16.mxu0 %v1236
    %1901 = vmatpush1.bf16.msra.mxu0 %v1235
    %1902 = vmatprep.subr.bf16.mxu0 %v1296
    %1903 = vmatpush2.bf16.msra.mxu0 %v1295
    %1904 = vmatprep.subr.bf16.mxu0 %v1292
    %1905 = vmatpush2.bf16.msra.mxu0 %v1291
    %1906 = vmatprep.subr.bf16.mxu0 %v1288
    %1907 = vmatpush2.bf16.msra.mxu0 %v1287
    %1908 = vmatprep.subr.bf16.mxu0 %v1284
    %1909 = vmatpush2.bf16.msra.mxu0 %v1283
    %1910 = vmatprep.subr.bf16.mxu0 %v1280
    %1911 = vmatpush2.bf16.msra.mxu0 %v1279
    %1912 = vmatprep.subr.bf16.mxu0 %v1276
    %1913 = vmatpush2.bf16.msra.mxu0 %v1275
    %1914 = vmatprep.subr.bf16.mxu0 %v1272
    %1915 = vmatpush2.bf16.msra.mxu0 %v1271
    %1916 = vmatprep.subr.bf16.mxu0 %v1268
    %1917 = vmatpush2.bf16.msra.mxu0 %v1267
    %1918 = vmatprep.mubr.bf16.mxu0 %v388
    %1919 = vmatmul.mubr.bf16.gmra.mxu0 %v387
    %v1920 = vpop.f32.mrf.mxu0
    %v1921 = vadd.f32 %v1880, %v1920
    %v1922 = vpop.f32.mrf.mxu0
    %v1923 = vadd.f32 %v1882, %v1922
    %v1924 = vpop.f32.mrf.mxu0
    %v1925 = vpop.f32.mrf.mxu0
    %1926 = vdwg.mxu0
    %1927 = vmatprep.subr.bf16.mxu0 %v1328
    %1928 = vmatpush1.bf16.msra.mxu0 %v1327
    %1929 = vmatprep.subr.bf16.mxu0 %v1324
    %1930 = vmatpush1.bf16.msra.mxu0 %v1323
    %1931 = vmatprep.subr.bf16.mxu0 %v1320
    %1932 = vmatpush1.bf16.msra.mxu0 %v1319
    %1933 = vmatprep.subr.bf16.mxu0 %v1316
    %1934 = vmatpush1.bf16.msra.mxu0 %v1315
    %1935 = vmatprep.subr.bf16.mxu0 %v1312
    %1936 = vmatpush1.bf16.msra.mxu0 %v1311
    %1937 = vmatprep.subr.bf16.mxu0 %v1308
    %1938 = vmatpush1.bf16.msra.mxu0 %v1307
    %1939 = vmatprep.subr.bf16.mxu0 %v1304
    %1940 = vmatpush1.bf16.msra.mxu0 %v1303
    %1941 = vmatprep.subr.bf16.mxu0 %v1300
    %1942 = vmatpush1.bf16.msra.mxu0 %v1299
    %1943 = vmatprep.subr.bf16.mxu0 %v1360
    %1944 = vmatpush2.bf16.msra.mxu0 %v1359
    %1945 = vmatprep.subr.bf16.mxu0 %v1356
    %1946 = vmatpush2.bf16.msra.mxu0 %v1355
    %1947 = vmatprep.subr.bf16.mxu0 %v1352
    %1948 = vmatpush2.bf16.msra.mxu0 %v1351
    %1949 = vmatprep.subr.bf16.mxu0 %v1348
    %1950 = vmatpush2.bf16.msra.mxu0 %v1347
    %1951 = vmatprep.subr.bf16.mxu0 %v1344
    %1952 = vmatpush2.bf16.msra.mxu0 %v1343
    %1953 = vmatprep.subr.bf16.mxu0 %v1340
    %1954 = vmatpush2.bf16.msra.mxu0 %v1339
    %1955 = vmatprep.subr.bf16.mxu0 %v1336
    %1956 = vmatpush2.bf16.msra.mxu0 %v1335
    %1957 = vmatprep.subr.bf16.mxu0 %v1332
    %1958 = vmatpush2.bf16.msra.mxu0 %v1331
    %1959 = vmatprep.mubr.bf16.mxu0 %v390
    %1960 = vmatmul.mubr.bf16.gmra.mxu0 %v389
    %v1961 = vpop.f32.mrf.mxu0
    %v1962 = vadd.f32 %v1921, %v1961
    %v1963 = vpop.f32.mrf.mxu0
    %v1964 = vadd.f32 %v1923, %v1963
    %v1965 = vpop.f32.mrf.mxu0
    %v1966 = vpop.f32.mrf.mxu0
    %1967 = vdwg.mxu0
    %1968 = vmatprep.subr.bf16.mxu0 %v1392
    %1969 = vmatpush1.bf16.msra.mxu0 %v1391
    %1970 = vmatprep.subr.bf16.mxu0 %v1388
    %1971 = vmatpush1.bf16.msra.mxu0 %v1387
    %1972 = vmatprep.subr.bf16.mxu0 %v1384
    %1973 = vmatpush1.bf16.msra.mxu0 %v1383
    %1974 = vmatprep.subr.bf16.mxu0 %v1380
    %1975 = vmatpush1.bf16.msra.mxu0 %v1379
    %1976 = vmatprep.subr.bf16.mxu0 %v1376
    %1977 = vmatpush1.bf16.msra.mxu0 %v1375
    %1978 = vmatprep.subr.bf16.mxu0 %v1372
    %1979 = vmatpush1.bf16.msra.mxu0 %v1371
    %1980 = vmatprep.subr.bf16.mxu0 %v1368
    %1981 = vmatpush1.bf16.msra.mxu0 %v1367
    %1982 = vmatprep.subr.bf16.mxu0 %v1364
    %1983 = vmatpush1.bf16.msra.mxu0 %v1363
    %1984 = vmatprep.subr.bf16.mxu0 %v1424
    %1985 = vmatpush2.bf16.msra.mxu0 %v1423
    %1986 = vmatprep.subr.bf16.mxu0 %v1420
    %1987 = vmatpush2.bf16.msra.mxu0 %v1419
    %1988 = vmatprep.subr.bf16.mxu0 %v1416
    %1989 = vmatpush2.bf16.msra.mxu0 %v1415
    %1990 = vmatprep.subr.bf16.mxu0 %v1412
    %1991 = vmatpush2.bf16.msra.mxu0 %v1411
    %1992 = vmatprep.subr.bf16.mxu0 %v1408
    %1993 = vmatpush2.bf16.msra.mxu0 %v1407
    %1994 = vmatprep.subr.bf16.mxu0 %v1404
    %1995 = vmatpush2.bf16.msra.mxu0 %v1403
    %1996 = vmatprep.subr.bf16.mxu0 %v1400
    %1997 = vmatpush2.bf16.msra.mxu0 %v1399
    %1998 = vmatprep.subr.bf16.mxu0 %v1396
    %1999 = vmatpush2.bf16.msra.mxu0 %v1395
    %2000 = vmatprep.mubr.bf16.mxu0 %v392
    %2001 = vmatmul.mubr.bf16.gmra.mxu0 %v391
    %v2002 = vpop.f32.mrf.mxu0
    %v2003 = vadd.f32 %v1962, %v2002
    %v2004 = vpop.f32.mrf.mxu0
    %v2005 = vadd.f32 %v1964, %v2004
    %v2006 = vpop.f32.mrf.mxu0
    %v2007 = vpop.f32.mrf.mxu0
    %2008 = vdwg.mxu0
    %vm2009 = vcmp.gt.f32.partialorder %v1839, 0.0
    %vm2010 = vcmp.gt.f32.partialorder %v1841, 0.0
    %vm2011 = vcmp.gt.f32.partialorder %v2003, 0.0
    %vm2012 = vcmp.gt.f32.partialorder %v2005, 0.0
    %v2013 = vmul.f32 %v1839, 0.2
    %v2014 = vmul.f32 %v1841, 0.2
    %v2015 = vmul.f32 %v2003, 0.2
    %v2016 = vmul.f32 %v2005, 0.2
    %v2017 = vsel %vm2009, %v1839, %v2013
    %v2018 = vsel %vm2010, %v1841, %v2014
    %v2019 = vsel %vm2011, %v2003, %v2015
    %v2020 = vsel %vm2012, %v2005, %v2016
    %v2021 = vld [vmem:[#allocation8] sm:$0xff]
    %v2022 = vld [vmem:[#allocation8 + $0x8] sm:$0xff]
    %v2023 = vld [vmem:[#allocation8 + $0x10] sm:$0xff]
    %v2024 = vld [vmem:[#allocation8 + $0x18] sm:$0xff]
    %v2025 = vld [vmem:[#allocation8 + $0x20] sm:$0xff]
    %v2026 = vld [vmem:[#allocation8 + $0x28] sm:$0xff]
    %v2027 = vld [vmem:[#allocation8 + $0x30] sm:$0xff]
    %v2028 = vld [vmem:[#allocation8 + $0x38] sm:$0xff]
    %v2029 = vld [vmem:[#allocation8 + $0x40] sm:$0xff]
    %v2030 = vld [vmem:[#allocation8 + $0x48] sm:$0xff]
    %v2031 = vld [vmem:[#allocation8 + $0x50] sm:$0xff]
    %v2032 = vld [vmem:[#allocation8 + $0x58] sm:$0xff]
    %v2033 = vld [vmem:[#allocation8 + $0x60] sm:$0xff]
    %v2034 = vld [vmem:[#allocation8 + $0x68] sm:$0xff]
    %v2035 = vld [vmem:[#allocation8 + $0x70] sm:$0xff]
    %v2036 = vld [vmem:[#allocation8 + $0x78] sm:$0xff]
    %v2037 = vld [vmem:[#allocation8 + $0x80] sm:$0xff]
    %v2038 = vld [vmem:[#allocation8 + $0x88] sm:$0xff]
    %v2039 = vld [vmem:[#allocation8 + $0x90] sm:$0xff]
    %v2040 = vld [vmem:[#allocation8 + $0x98] sm:$0xff]
    %v2041 = vld [vmem:[#allocation8 + $0xa0] sm:$0xff]
    %v2042 = vld [vmem:[#allocation8 + $0xa8] sm:$0xff]
    %v2043 = vld [vmem:[#allocation8 + $0xb0] sm:$0xff]
    %v2044 = vld [vmem:[#allocation8 + $0xb8] sm:$0xff]
    %v2045 = vld [vmem:[#allocation8 + $0xc0] sm:$0xff]
    %v2046 = vld [vmem:[#allocation8 + $0xc8] sm:$0xff]
    %v2047 = vld [vmem:[#allocation8 + $0xd0] sm:$0xff]
    %v2048 = vld [vmem:[#allocation8 + $0xd8] sm:$0xff]
    %v2049 = vld [vmem:[#allocation8 + $0xe0] sm:$0xff]
    %v2050 = vld [vmem:[#allocation8 + $0xe8] sm:$0xff]
    %v2051 = vld [vmem:[#allocation8 + $0xf0] sm:$0xff]
    %v2052 = vld [vmem:[#allocation8 + $0xf8] sm:$0xff]
    %v2053 = vld [vmem:[#allocation8 + $0x100] sm:$0xff]
    %v2054 = vld [vmem:[#allocation8 + $0x108] sm:$0xff]
    %v2055 = vld [vmem:[#allocation8 + $0x110] sm:$0xff]
    %v2056 = vld [vmem:[#allocation8 + $0x118] sm:$0xff]
    %v2057 = vld [vmem:[#allocation8 + $0x120] sm:$0xff]
    %v2058 = vld [vmem:[#allocation8 + $0x128] sm:$0xff]
    %v2059 = vld [vmem:[#allocation8 + $0x130] sm:$0xff]
    %v2060 = vld [vmem:[#allocation8 + $0x138] sm:$0xff]
    %v2061 = vld [vmem:[#allocation8 + $0x140] sm:$0xff]
    %v2062 = vld [vmem:[#allocation8 + $0x148] sm:$0xff]
    %v2063 = vld [vmem:[#allocation8 + $0x150] sm:$0xff]
    %v2064 = vld [vmem:[#allocation8 + $0x158] sm:$0xff]
    %v2065 = vld [vmem:[#allocation8 + $0x160] sm:$0xff]
    %v2066 = vld [vmem:[#allocation8 + $0x168] sm:$0xff]
    %v2067 = vld [vmem:[#allocation8 + $0x170] sm:$0xff]
    %v2068 = vld [vmem:[#allocation8 + $0x178] sm:$0xff]
    %v2069 = vld [vmem:[#allocation8 + $0x180] sm:$0xff]
    %v2070 = vld [vmem:[#allocation8 + $0x188] sm:$0xff]
    %v2071 = vld [vmem:[#allocation8 + $0x190] sm:$0xff]
    %v2072 = vld [vmem:[#allocation8 + $0x198] sm:$0xff]
    %v2073 = vld [vmem:[#allocation8 + $0x1a0] sm:$0xff]
    %v2074 = vld [vmem:[#allocation8 + $0x1a8] sm:$0xff]
    %v2075 = vld [vmem:[#allocation8 + $0x1b0] sm:$0xff]
    %v2076 = vld [vmem:[#allocation8 + $0x1b8] sm:$0xff]
    %v2077 = vld [vmem:[#allocation8 + $0x1c0] sm:$0xff]
    %v2078 = vld [vmem:[#allocation8 + $0x1c8] sm:$0xff]
    %v2079 = vld [vmem:[#allocation8 + $0x1d0] sm:$0xff]
    %v2080 = vld [vmem:[#allocation8 + $0x1d8] sm:$0xff]
    %v2081 = vld [vmem:[#allocation8 + $0x1e0] sm:$0xff]
    %v2082 = vld [vmem:[#allocation8 + $0x1e8] sm:$0xff]
    %v2083 = vld [vmem:[#allocation8 + $0x1f0] sm:$0xff]
    %v2084 = vld [vmem:[#allocation8 + $0x1f8] sm:$0xff]
    %v2085 = vld [vmem:[#allocation8 + $0x200] sm:$0xff]
    %v2086 = vld [vmem:[#allocation8 + $0x208] sm:$0xff]
    %v2087 = vld [vmem:[#allocation8 + $0x210] sm:$0xff]
    %v2088 = vld [vmem:[#allocation8 + $0x218] sm:$0xff]
    %v2089 = vld [vmem:[#allocation8 + $0x220] sm:$0xff]
    %v2090 = vld [vmem:[#allocation8 + $0x228] sm:$0xff]
    %v2091 = vld [vmem:[#allocation8 + $0x230] sm:$0xff]
    %v2092 = vld [vmem:[#allocation8 + $0x238] sm:$0xff]
    %v2093 = vld [vmem:[#allocation8 + $0x240] sm:$0xff]
    %v2094 = vld [vmem:[#allocation8 + $0x248] sm:$0xff]
    %v2095 = vld [vmem:[#allocation8 + $0x250] sm:$0xff]
    %v2096 = vld [vmem:[#allocation8 + $0x258] sm:$0xff]
    %v2097 = vld [vmem:[#allocation8 + $0x260] sm:$0xff]
    %v2098 = vld [vmem:[#allocation8 + $0x268] sm:$0xff]
    %v2099 = vld [vmem:[#allocation8 + $0x270] sm:$0xff]
    %v2100 = vld [vmem:[#allocation8 + $0x278] sm:$0xff]
    %v2101 = vld [vmem:[#allocation8 + $0x280] sm:$0xff]
    %v2102 = vld [vmem:[#allocation8 + $0x288] sm:$0xff]
    %v2103 = vld [vmem:[#allocation8 + $0x290] sm:$0xff]
    %v2104 = vld [vmem:[#allocation8 + $0x298] sm:$0xff]
    %v2105 = vld [vmem:[#allocation8 + $0x2a0] sm:$0xff]
    %v2106 = vld [vmem:[#allocation8 + $0x2a8] sm:$0xff]
    %v2107 = vld [vmem:[#allocation8 + $0x2b0] sm:$0xff]
    %v2108 = vld [vmem:[#allocation8 + $0x2b8] sm:$0xff]
    %v2109 = vld [vmem:[#allocation8 + $0x2c0] sm:$0xff]
    %v2110 = vld [vmem:[#allocation8 + $0x2c8] sm:$0xff]
    %v2111 = vld [vmem:[#allocation8 + $0x2d0] sm:$0xff]
    %v2112 = vld [vmem:[#allocation8 + $0x2d8] sm:$0xff]
    %v2113 = vld [vmem:[#allocation8 + $0x2e0] sm:$0xff]
    %v2114 = vld [vmem:[#allocation8 + $0x2e8] sm:$0xff]
    %v2115 = vld [vmem:[#allocation8 + $0x2f0] sm:$0xff]
    %v2116 = vld [vmem:[#allocation8 + $0x2f8] sm:$0xff]
    %v2117 = vld [vmem:[#allocation8 + $0x300] sm:$0xff]
    %v2118 = vld [vmem:[#allocation8 + $0x308] sm:$0xff]
    %v2119 = vld [vmem:[#allocation8 + $0x310] sm:$0xff]
    %v2120 = vld [vmem:[#allocation8 + $0x318] sm:$0xff]
    %v2121 = vld [vmem:[#allocation8 + $0x320] sm:$0xff]
    %v2122 = vld [vmem:[#allocation8 + $0x328] sm:$0xff]
    %v2123 = vld [vmem:[#allocation8 + $0x330] sm:$0xff]
    %v2124 = vld [vmem:[#allocation8 + $0x338] sm:$0xff]
    %v2125 = vld [vmem:[#allocation8 + $0x340] sm:$0xff]
    %v2126 = vld [vmem:[#allocation8 + $0x348] sm:$0xff]
    %v2127 = vld [vmem:[#allocation8 + $0x350] sm:$0xff]
    %v2128 = vld [vmem:[#allocation8 + $0x358] sm:$0xff]
    %v2129 = vld [vmem:[#allocation8 + $0x360] sm:$0xff]
    %v2130 = vld [vmem:[#allocation8 + $0x368] sm:$0xff]
    %v2131 = vld [vmem:[#allocation8 + $0x370] sm:$0xff]
    %v2132 = vld [vmem:[#allocation8 + $0x378] sm:$0xff]
    %v2133 = vld [vmem:[#allocation8 + $0x380] sm:$0xff]
    %v2134 = vld [vmem:[#allocation8 + $0x388] sm:$0xff]
    %v2135 = vld [vmem:[#allocation8 + $0x390] sm:$0xff]
    %v2136 = vld [vmem:[#allocation8 + $0x398] sm:$0xff]
    %v2137 = vld [vmem:[#allocation8 + $0x3a0] sm:$0xff]
    %v2138 = vld [vmem:[#allocation8 + $0x3a8] sm:$0xff]
    %v2139 = vld [vmem:[#allocation8 + $0x3b0] sm:$0xff]
    %v2140 = vld [vmem:[#allocation8 + $0x3b8] sm:$0xff]
    %v2141 = vld [vmem:[#allocation8 + $0x3c0] sm:$0xff]
    %v2142 = vld [vmem:[#allocation8 + $0x3c8] sm:$0xff]
    %v2143 = vld [vmem:[#allocation8 + $0x3d0] sm:$0xff]
    %v2144 = vld [vmem:[#allocation8 + $0x3d8] sm:$0xff]
    %v2145 = vld [vmem:[#allocation8 + $0x3e0] sm:$0xff]
    %v2146 = vld [vmem:[#allocation8 + $0x3e8] sm:$0xff]
    %v2147 = vld [vmem:[#allocation8 + $0x3f0] sm:$0xff]
    %v2148 = vld [vmem:[#allocation8 + $0x3f8] sm:$0xff]
    %v2149 = vld [vmem:[%s4] sm:$0x3]
    %v2151 = vlaneseq
    %v2152 = vshrl.u32 %v2151, 7
    %v2153 = vsub.s32 0, %v2152
    %v2154 = vrot.slane %v2149, %v2153
    %v2155 = vlaneseq
    %v2156 = vshrl.u32 %v2155, 7
    %v2157 = vsub.s32 1, %v2156
    %v2158 = vrot.slane %v2149, %v2157
    %2161 = vmatprep.subr.mxu0 %v2052
    %2162 = vmatpush1.msra.mxu0 %v2051
    %2163 = vmatprep.subr.mxu0 %v2050
    %2164 = vmatpush1.msra.mxu0 %v2049
    %2165 = vmatprep.subr.mxu0 %v2048
    %2166 = vmatpush1.msra.mxu0 %v2047
    %2167 = vmatprep.subr.mxu0 %v2046
    %2168 = vmatpush1.msra.mxu0 %v2045
    %2169 = vmatprep.subr.mxu0 %v2044
    %2170 = vmatpush1.msra.mxu0 %v2043
    %2171 = vmatprep.subr.mxu0 %v2042
    %2172 = vmatpush1.msra.mxu0 %v2041
    %2173 = vmatprep.subr.mxu0 %v2040
    %2174 = vmatpush1.msra.mxu0 %v2039
    %2175 = vmatprep.subr.mxu0 %v2038
    %2176 = vmatpush1.msra.mxu0 %v2037
    %2177 = vmatprep.subr.mxu0 %v2036
    %2178 = vmatpush1.msra.mxu0 %v2035
    %2179 = vmatprep.subr.mxu0 %v2034
    %2180 = vmatpush1.msra.mxu0 %v2033
    %2181 = vmatprep.subr.mxu0 %v2032
    %2182 = vmatpush1.msra.mxu0 %v2031
    %2183 = vmatprep.subr.mxu0 %v2030
    %2184 = vmatpush1.msra.mxu0 %v2029
    %2185 = vmatprep.subr.mxu0 %v2028
    %2186 = vmatpush1.msra.mxu0 %v2027
    %2187 = vmatprep.subr.mxu0 %v2026
    %2188 = vmatpush1.msra.mxu0 %v2025
    %2189 = vmatprep.subr.mxu0 %v2024
    %2190 = vmatpush1.msra.mxu0 %v2023
    %2191 = vmatprep.subr.mxu0 %v2022
    %2192 = vmatpush1.msra.mxu0 %v2021
    %2193 = vmatprep.subr.mxu0 %v2084
    %2194 = vmatpush2.msra.mxu0 %v2083
    %2195 = vmatprep.subr.mxu0 %v2082
    %2196 = vmatpush2.msra.mxu0 %v2081
    %2197 = vmatprep.subr.mxu0 %v2080
    %2198 = vmatpush2.msra.mxu0 %v2079
    %2199 = vmatprep.subr.mxu0 %v2078
    %2200 = vmatpush2.msra.mxu0 %v2077
    %2201 = vmatprep.subr.mxu0 %v2076
    %2202 = vmatpush2.msra.mxu0 %v2075
    %2203 = vmatprep.subr.mxu0 %v2074
    %2204 = vmatpush2.msra.mxu0 %v2073
    %2205 = vmatprep.subr.mxu0 %v2072
    %2206 = vmatpush2.msra.mxu0 %v2071
    %2207 = vmatprep.subr.mxu0 %v2070
    %2208 = vmatpush2.msra.mxu0 %v2069
    %2209 = vmatprep.subr.mxu0 %v2068
    %2210 = vmatpush2.msra.mxu0 %v2067
    %2211 = vmatprep.subr.mxu0 %v2066
    %2212 = vmatpush2.msra.mxu0 %v2065
    %2213 = vmatprep.subr.mxu0 %v2064
    %2214 = vmatpush2.msra.mxu0 %v2063
    %2215 = vmatprep.subr.mxu0 %v2062
    %2216 = vmatpush2.msra.mxu0 %v2061
    %2217 = vmatprep.subr.mxu0 %v2060
    %2218 = vmatpush2.msra.mxu0 %v2059
    %2219 = vmatprep.subr.mxu0 %v2058
    %2220 = vmatpush2.msra.mxu0 %v2057
    %2221 = vmatprep.subr.mxu0 %v2056
    %2222 = vmatpush2.msra.mxu0 %v2055
    %2223 = vmatprep.subr.mxu0 %v2054
    %2224 = vmatpush2.msra.mxu0 %v2053
    %2225 = vmatprep.mubr.f32.mxu0 %v2018
    %2226 = vmatmul.mubr.f32.gmra.mxu0 %v2017
    %v2227 = vpop.f32.mrf.mxu0
    %v2228 = vadd.f32 %v2154, %v2227
    %v2229 = vpop.f32.mrf.mxu0
    %v2230 = vadd.f32 %v2158, %v2229
    %2231 = vdwg.mxu0
    %2232 = vmatprep.subr.mxu0 %v2116
    %2233 = vmatpush1.msra.mxu0 %v2115
    %2234 = vmatprep.subr.mxu0 %v2114
    %2235 = vmatpush1.msra.mxu0 %v2113
    %2236 = vmatprep.subr.mxu0 %v2112
    %2237 = vmatpush1.msra.mxu0 %v2111
    %2238 = vmatprep.subr.mxu0 %v2110
    %2239 = vmatpush1.msra.mxu0 %v2109
    %2240 = vmatprep.subr.mxu0 %v2108
    %2241 = vmatpush1.msra.mxu0 %v2107
    %2242 = vmatprep.subr.mxu0 %v2106
    %2243 = vmatpush1.msra.mxu0 %v2105
    %2244 = vmatprep.subr.mxu0 %v2104
    %2245 = vmatpush1.msra.mxu0 %v2103
    %2246 = vmatprep.subr.mxu0 %v2102
    %2247 = vmatpush1.msra.mxu0 %v2101
    %2248 = vmatprep.subr.mxu0 %v2100
    %2249 = vmatpush1.msra.mxu0 %v2099
    %2250 = vmatprep.subr.mxu0 %v2098
    %2251 = vmatpush1.msra.mxu0 %v2097
    %2252 = vmatprep.subr.mxu0 %v2096
    %2253 = vmatpush1.msra.mxu0 %v2095
    %2254 = vmatprep.subr.mxu0 %v2094
    %2255 = vmatpush1.msra.mxu0 %v2093
    %2256 = vmatprep.subr.mxu0 %v2092
    %2257 = vmatpush1.msra.mxu0 %v2091
    %2258 = vmatprep.subr.mxu0 %v2090
    %2259 = vmatpush1.msra.mxu0 %v2089
    %2260 = vmatprep.subr.mxu0 %v2088
    %2261 = vmatpush1.msra.mxu0 %v2087
    %2262 = vmatprep.subr.mxu0 %v2086
    %2263 = vmatpush1.msra.mxu0 %v2085
    %2264 = vmatprep.subr.mxu0 %v2148
    %2265 = vmatpush2.msra.mxu0 %v2147
    %2266 = vmatprep.subr.mxu0 %v2146
    %2267 = vmatpush2.msra.mxu0 %v2145
    %2268 = vmatprep.subr.mxu0 %v2144
    %2269 = vmatpush2.msra.mxu0 %v2143
    %2270 = vmatprep.subr.mxu0 %v2142
    %2271 = vmatpush2.msra.mxu0 %v2141
    %2272 = vmatprep.subr.mxu0 %v2140
    %2273 = vmatpush2.msra.mxu0 %v2139
    %2274 = vmatprep.subr.mxu0 %v2138
    %2275 = vmatpush2.msra.mxu0 %v2137
    %2276 = vmatprep.subr.mxu0 %v2136
    %2277 = vmatpush2.msra.mxu0 %v2135
    %2278 = vmatprep.subr.mxu0 %v2134
    %2279 = vmatpush2.msra.mxu0 %v2133
    %2280 = vmatprep.subr.mxu0 %v2132
    %2281 = vmatpush2.msra.mxu0 %v2131
    %2282 = vmatprep.subr.mxu0 %v2130
    %2283 = vmatpush2.msra.mxu0 %v2129
    %2284 = vmatprep.subr.mxu0 %v2128
    %2285 = vmatpush2.msra.mxu0 %v2127
    %2286 = vmatprep.subr.mxu0 %v2126
    %2287 = vmatpush2.msra.mxu0 %v2125
    %2288 = vmatprep.subr.mxu0 %v2124
    %2289 = vmatpush2.msra.mxu0 %v2123
    %2290 = vmatprep.subr.mxu0 %v2122
    %2291 = vmatpush2.msra.mxu0 %v2121
    %2292 = vmatprep.subr.mxu0 %v2120
    %2293 = vmatpush2.msra.mxu0 %v2119
    %2294 = vmatprep.subr.mxu0 %v2118
    %2295 = vmatpush2.msra.mxu0 %v2117
    %2296 = vmatprep.mubr.f32.mxu0 %v2020
    %2297 = vmatmul.mubr.f32.gmra.mxu0 %v2019
    %v2298 = vpop.f32.mrf.mxu0
    %v2299 = vadd.f32 %v2228, %v2298
    %v2300 = vpop.f32.mrf.mxu0
    %v2301 = vadd.f32 %v2230, %v2300
    %2302 = vdwg.mxu0
    %vm2303 = vcmp.gt.f32.partialorder %v2299, 0.0
    %vm2304 = vcmp.gt.f32.partialorder %v2301, 0.0
    %v2305 = vmul.f32 %v2299, 0.2
    %v2306 = vmul.f32 %v2301, 0.2
    %v2307 = vsel %vm2303, %v2299, %v2305
    %v2308 = vsel %vm2304, %v2301, %v2306
    %v2309 = vld [vmem:[#allocation10] sm:$0xff]
    %v2310 = vld [vmem:[#allocation10 + $0x8] sm:$0xff]
    %v2311 = vld [vmem:[#allocation10 + $0x10] sm:$0xff]
    %v2312 = vld [vmem:[#allocation10 + $0x18] sm:$0xff]
    %v2313 = vld [vmem:[#allocation10 + $0x20] sm:$0xff]
    %v2314 = vld [vmem:[#allocation10 + $0x28] sm:$0xff]
    %v2315 = vld [vmem:[#allocation10 + $0x30] sm:$0xff]
    %v2316 = vld [vmem:[#allocation10 + $0x38] sm:$0xff]
    %v2317 = vld [vmem:[#allocation10 + $0x40] sm:$0xff]
    %v2318 = vld [vmem:[#allocation10 + $0x48] sm:$0xff]
    %v2319 = vld [vmem:[#allocation10 + $0x50] sm:$0xff]
    %v2320 = vld [vmem:[#allocation10 + $0x58] sm:$0xff]
    %v2321 = vld [vmem:[#allocation10 + $0x60] sm:$0xff]
    %v2322 = vld [vmem:[#allocation10 + $0x68] sm:$0xff]
    %v2323 = vld [vmem:[#allocation10 + $0x70] sm:$0xff]
    %v2324 = vld [vmem:[#allocation10 + $0x78] sm:$0xff]
    %v2325 = vld [vmem:[#allocation10 + $0x80] sm:$0xff]
    %v2326 = vld [vmem:[#allocation10 + $0x88] sm:$0xff]
    %v2327 = vld [vmem:[#allocation10 + $0x90] sm:$0xff]
    %v2328 = vld [vmem:[#allocation10 + $0x98] sm:$0xff]
    %v2329 = vld [vmem:[#allocation10 + $0xa0] sm:$0xff]
    %v2330 = vld [vmem:[#allocation10 + $0xa8] sm:$0xff]
    %v2331 = vld [vmem:[#allocation10 + $0xb0] sm:$0xff]
    %v2332 = vld [vmem:[#allocation10 + $0xb8] sm:$0xff]
    %v2333 = vld [vmem:[#allocation10 + $0xc0] sm:$0xff]
    %v2334 = vld [vmem:[#allocation10 + $0xc8] sm:$0xff]
    %v2335 = vld [vmem:[#allocation10 + $0xd0] sm:$0xff]
    %v2336 = vld [vmem:[#allocation10 + $0xd8] sm:$0xff]
    %v2337 = vld [vmem:[#allocation10 + $0xe0] sm:$0xff]
    %v2338 = vld [vmem:[#allocation10 + $0xe8] sm:$0xff]
    %v2339 = vld [vmem:[#allocation10 + $0xf0] sm:$0xff]
    %v2340 = vld [vmem:[#allocation10 + $0xf8] sm:$0xff]
    %v2341 = vld [vmem:[%s6] sm:$0x1]
    %v2343 = vlaneseq
    %v2344 = vshrl.u32 %v2343, 7
    %v2345 = vsub.s32 0, %v2344
    %v2346 = vrot.slane %v2341, %v2345
    %2348 = vmatprep.subr.mxu0 0.0
    %2349 = vmatpush1.msra.mxu0 %v2324
    %2350 = vmatprep.subr.mxu0 0.0
    %2351 = vmatpush1.msra.mxu0 %v2323
    %2352 = vmatprep.subr.mxu0 0.0
    %2353 = vmatpush1.msra.mxu0 %v2322
    %2354 = vmatprep.subr.mxu0 0.0
    %2355 = vmatpush1.msra.mxu0 %v2321
    %2356 = vmatprep.subr.mxu0 0.0
    %2357 = vmatpush1.msra.mxu0 %v2320
    %2358 = vmatprep.subr.mxu0 0.0
    %2359 = vmatpush1.msra.mxu0 %v2319
    %2360 = vmatprep.subr.mxu0 0.0
    %2361 = vmatpush1.msra.mxu0 %v2318
    %2362 = vmatprep.subr.mxu0 0.0
    %2363 = vmatpush1.msra.mxu0 %v2317
    %2364 = vmatprep.subr.mxu0 0.0
    %2365 = vmatpush1.msra.mxu0 %v2316
    %2366 = vmatprep.subr.mxu0 0.0
    %2367 = vmatpush1.msra.mxu0 %v2315
    %2368 = vmatprep.subr.mxu0 0.0
    %2369 = vmatpush1.msra.mxu0 %v2314
    %2370 = vmatprep.subr.mxu0 0.0
    %2371 = vmatpush1.msra.mxu0 %v2313
    %2372 = vmatprep.subr.mxu0 0.0
    %2373 = vmatpush1.msra.mxu0 %v2312
    %2374 = vmatprep.subr.mxu0 0.0
    %2375 = vmatpush1.msra.mxu0 %v2311
    %2376 = vmatprep.subr.mxu0 0.0
    %2377 = vmatpush1.msra.mxu0 %v2310
    %2378 = vmatprep.subr.mxu0 0.0
    %2379 = vmatpush1.msra.mxu0 %v2309
    %2380 = vmatprep.subr.mxu0 0.0
    %2381 = vmatpush2.msra.mxu0 %v2340
    %2382 = vmatprep.subr.mxu0 0.0
    %2383 = vmatpush2.msra.mxu0 %v2339
    %2384 = vmatprep.subr.mxu0 0.0
    %2385 = vmatpush2.msra.mxu0 %v2338
    %2386 = vmatprep.subr.mxu0 0.0
    %2387 = vmatpush2.msra.mxu0 %v2337
    %2388 = vmatprep.subr.mxu0 0.0
    %2389 = vmatpush2.msra.mxu0 %v2336
    %2390 = vmatprep.subr.mxu0 0.0
    %2391 = vmatpush2.msra.mxu0 %v2335
    %2392 = vmatprep.subr.mxu0 0.0
    %2393 = vmatpush2.msra.mxu0 %v2334
    %2394 = vmatprep.subr.mxu0 0.0
    %2395 = vmatpush2.msra.mxu0 %v2333
    %2396 = vmatprep.subr.mxu0 0.0
    %2397 = vmatpush2.msra.mxu0 %v2332
    %2398 = vmatprep.subr.mxu0 0.0
    %2399 = vmatpush2.msra.mxu0 %v2331
    %2400 = vmatprep.subr.mxu0 0.0
    %2401 = vmatpush2.msra.mxu0 %v2330
    %2402 = vmatprep.subr.mxu0 0.0
    %2403 = vmatpush2.msra.mxu0 %v2329
    %2404 = vmatprep.subr.mxu0 0.0
    %2405 = vmatpush2.msra.mxu0 %v2328
    %2406 = vmatprep.subr.mxu0 0.0
    %2407 = vmatpush2.msra.mxu0 %v2327
    %2408 = vmatprep.subr.mxu0 0.0
    %2409 = vmatpush2.msra.mxu0 %v2326
    %2410 = vmatprep.subr.mxu0 0.0
    %2411 = vmatpush2.msra.mxu0 %v2325
    %2412 = vmatprep.mubr.f32.mxu0 %v2308
    %2413 = vmatmul.mubr.f32.gmra.mxu0 %v2307
    %v2414 = vpop.f32.mrf.mxu0
    %v2415 = vadd.f32 %v2346, %v2414
    %v2416 = vpop.f32.mrf.mxu0
    %2417 = vdwg.mxu0
    %v2418 = vxor.u32 %v2415, 2147483648
    %v2419 = vmul.f32 %v2418, 1.442695
    %v2420 = vpow.pop %v2419
    %v2421 = vadd.f32 %v2420, 1.0
    %v2422 = vrcp.pop %v2421
    %v2423 = vmul.f32 1.0, %v2422
    %2424 = vst [vmem:[#allocation11] sm:$0xff] %v2423
    // Predicated region
    $region50: #{tpu_custom_call.1} parent=1 // pred_check
      _
    $region51: #{tpu_custom_call.1} parent=1 // pred_check_branch
      %2426 = sbr.rel (0) target = $region53
    $region52: #{tpu_custom_call.1} parent=1 // pred_region
      %s2428 = ssub.s32 128, 128
      %2429 = vsyncadd [#allocation4], %s2428
      %s2431 = sshll.u32 [#allocation11], 4
      %s2432 = int_to_ptr.vmem [resolvable:$true] %s2431
      %2434 = dma.vmem_to_hbm [thread:$0]  %s2432, 128, %s7, [#allocation4]
    $region53: #{tpu_custom_call.1} parent=1 // pred_fallthru
      _
    // Predicated region
    $region54: #{tpu_custom_call.1} parent=1 // pred_check
      _
    $region55: #{tpu_custom_call.1} parent=1 // pred_check_branch
      %2436 = sbr.rel (0) target = $region57
    $region56: #{tpu_custom_call.1} parent=1 // pred_region
      %2437 = dma.done [#allocation4], 128
    $region57: #{tpu_custom_call.1} parent=1 // pred_fallthru
      _
    %2438 = vsyncpa [#allocation3], 1
    %2439 = vsyncpa [#allocation6], 1
    %2440 = vsyncpa [#allocation9], 1
    %2441 = vsyncpa [#allocation4], 1

</llo_original>
